<compile_context>
chip_gen: v5e
topology: v5e:2x2
jax: 0.10.0
libtpu: 0.0.40
codegen_flags: <defaults>
</compile_context>

<pallas_src>
import functools

import jax
import jax.numpy as jnp
from jax.experimental import pallas as pl
from jax.experimental.pallas import tpu as pltpu

LANE = 128

# rows of the per-layer coalesced bias / LayerNorm slab (n_layers, VEC_ROWS, W)
ROW_BQ, ROW_BK, ROW_BV, ROW_BO = 0, 1, 2, 3
ROW_LN1G, ROW_LN1B = 4, 5
ROW_B1, ROW_B2 = 6, 7
ROW_LN2G, ROW_LN2B = 8, 9
VEC_ROWS = 16   # pad the row count to a sublane multiple


def _round_up(x, m):
    return ((x + m - 1) // m) * m


def _bytes(a):
    # works for both concrete arrays and tracers (shape/dtype are static)
    return int(a.size) * jnp.dtype(a.dtype).itemsize


def _vmem_capacity_bytes():
    """Physical VMEM of the local TPU generation; conservative fallback = v7x."""
    try:
        info = pltpu.get_tpu_info()
        for attr in ("vmem_capacity_bytes", "vmem_bytes", "vmem_size_bytes"):
            v = getattr(info, attr, None)
            if v:
                return int(v)
    except Exception:
        pass
    return 64 << 20


def _layernorm(x, g, b, eps=1e-6):
    m = jnp.mean(x, -1, keepdims=True)
    v = jnp.mean((x - m) ** 2, -1, keepdims=True)
    return (x - m) * jax.lax.rsqrt(v + eps) * g + b


def _layernorm_masked(x, gamma, beta, d_real, eps=1e-6):
    """LayerNorm over the last dim where only the first d_real lanes are live.

    Lanes >= d_real of x are guaranteed zero and gamma/beta are zero-padded
    there, so padded lanes of the result stay exactly zero.
    """
    d_pad = x.shape[-1]
    mean = jnp.sum(x, axis=-1, keepdims=True) * (1.0 / d_real)
    c = x - mean
    ssq = jnp.sum(c * c, axis=-1, keepdims=True)
    # each of the (d_pad - d_real) zero lanes contributed mean^2 to ssq; remove it
    var = (ssq - (d_pad - d_real) * mean * mean) * (1.0 / d_real)
    return c * jax.lax.rsqrt(var + eps) * gamma + beta


# ------------------------------ fused kernel ----------------------------------

def tree_encoder_kernel(x0_ref, mask_ref, wq_ref, wk_ref, wv_ref, wo_ref,
                        w1_ref, w2_ref, vec_ref, out_ref,
                        *, n_head, d_k, d_v, d_model):
    l = pl.program_id(1)
    bt, L, Dp = out_ref.shape
    HKp = wq_ref.shape[2]
    HVp = wv_ref.shape[2]
    Fp = w1_ref.shape[2]
    HV = n_head * d_v

    # l == 0 prologue: seed the VMEM-resident activation from the pre-normalized,
    # lane-padded merged embedding (x0 is aliased to the output buffer in HBM).
    @pl.when(l == 0)
    def _():
        out_ref[...] = x0_ref[...]

    # out_ref is the running activation across the layer axis (padded lanes == 0).
    x = out_ref[...].reshape(bt * L, Dp)
    xb = x.astype(jnp.bfloat16)

    vec = vec_ref[0]                               # (VEC_ROWS, W) f32 bias/LN slab

    # exact masked_fill(mask == 0, -1e9):  s*keep + (keep-1)*1e9, keep in {0,1}
    keep = mask_ref[...]                           # (bt, 1, L) f32
    neg = (keep - 1.0) * 1e9

    # -------- multi-head self-attention (post-norm) ----------------------------
    q = jnp.dot(xb, wq_ref[0], preferred_element_type=jnp.float32) \
        + vec[ROW_BQ:ROW_BQ + 1, :HKp]
    k = jnp.dot(xb, wk_ref[0], preferred_element_type=jnp.float32) \
        + vec[ROW_BK:ROW_BK + 1, :HKp]
    v = jnp.dot(xb, wv_ref[0], preferred_element_type=jnp.float32) \
        + vec[ROW_BV:ROW_BV + 1, :HVp]

    inv_temp = 1.0 / (d_k ** 0.5)
    ctx_parts = []
    # n_head is small -> static unroll.
    # TODO(synk): for large n_head / L switch to lax.fori_loop (or a head grid
    # axis) so only one head's (bt, L, L) temporaries are live at a time.
    for h in range(n_head):
        qh = q[:, h * d_k:(h + 1) * d_k].reshape(bt, L, d_k).astype(jnp.bfloat16)
        kh = k[:, h * d_k:(h + 1) * d_k].reshape(bt, L, d_k).astype(jnp.bfloat16)
        vh = v[:, h * d_v:(h + 1) * d_v].reshape(bt, L, d_v).astype(jnp.bfloat16)
        s = jnp.einsum('bqd,bkd->bqk', qh, kh,
                       preferred_element_type=jnp.float32) * inv_temp
        s = s * keep + neg
        s = s - jnp.max(s, axis=-1, keepdims=True)
        e = jnp.exp(s)
        p = e * pl.reciprocal(jnp.sum(e, axis=-1, keepdims=True), approx=True)
        ctx = jnp.einsum('bqk,bkd->bqd', p.astype(jnp.bfloat16), vh,
                         preferred_element_type=jnp.float32)
        ctx_parts.append(ctx.reshape(bt * L, d_v))
    if HVp > HV:                                   # keep the contraction lane-dense
        ctx_parts.append(jnp.zeros((bt * L, HVp - HV), jnp.float32))
    ctx_full = jnp.concatenate(ctx_parts, axis=-1).astype(jnp.bfloat16)  # (btL, HVp)

    # single HVp-deep output projection (replaces n_head d_v-deep accumulations)
    o = jnp.dot(ctx_full, wo_ref[0], preferred_element_type=jnp.float32)
    o = o + vec[ROW_BO:ROW_BO + 1, :Dp] + x        # bias + residual (f32)
    o = _layernorm_masked(o, vec[ROW_LN1G:ROW_LN1G + 1, :Dp],
                          vec[ROW_LN1B:ROW_LN1B + 1, :Dp], d_model)

    # -------- position-wise feed-forward (post-norm) ---------------------------
    f = jnp.dot(o.astype(jnp.bfloat16), w1_ref[0],
                preferred_element_type=jnp.float32) + vec[ROW_B1:ROW_B1 + 1, :Fp]
    f = jnp.maximum(f, 0.0)
    f = jnp.dot(f.astype(jnp.bfloat16), w2_ref[0],
                preferred_element_type=jnp.float32) + vec[ROW_B2:ROW_B2 + 1, :Dp]
    f = f + o                                      # residual
    y = _layernorm_masked(f, vec[ROW_LN2G:ROW_LN2G + 1, :Dp],
                          vec[ROW_LN2B:ROW_LN2B + 1, :Dp], d_model)

    out_ref[...] = y.reshape(bt, L, Dp)


# ----------------------------- parameter setup --------------------------------

def init_params(key, *, vocab, n_levels, d_model, d_inner, n_head, d_k, d_v, n_layers):
    """Logical (torch-like) parameters: f32, per-layer dicts, unpadded."""
    keys = jax.random.split(key, 2 + n_layers)
    scale = 0.02
    word_table = scale * jax.random.normal(keys[0], (vocab, d_model), jnp.float32)
    word_table = word_table.at[0].set(0.0)         # Embeddings(padding_idx=0)
    level_table = scale * jax.random.normal(keys[1], (n_levels, d_model), jnp.float32)
    level_table = level_table.at[0].set(0.0)       # padding_idx=0

    params = {
        "word_table": word_table,
        "level_table": level_table,
        "enc_ln_g": jnp.ones((1, d_model), jnp.float32),
        "enc_ln_b": jnp.zeros((1, d_model), jnp.float32),
        "layers": [],
    }
    for li in range(n_layers):
        lk = jax.random.split(keys[2 + li], 6)
        params["layers"].append({
            "wq": scale * jax.random.normal(lk[0], (d_model, n_head * d_k), jnp.float32),
            "bq": jnp.zeros((1, n_head * d_k), jnp.float32),
            "wk": scale * jax.random.normal(lk[1], (d_model, n_head * d_k), jnp.float32),
            "bk": jnp.zeros((1, n_head * d_k), jnp.float32),
            "wv": scale * jax.random.normal(lk[2], (d_model, n_head * d_v), jnp.float32),
            "bv": jnp.zeros((1, n_head * d_v), jnp.float32),
            "wo": scale * jax.random.normal(lk[3], (n_head * d_v, d_model), jnp.float32),
            "bo": jnp.zeros((1, d_model), jnp.float32),
            "ln1_g": jnp.ones((1, d_model), jnp.float32),
            "ln1_b": jnp.zeros((1, d_model), jnp.float32),
            "w1": scale * jax.random.normal(lk[4], (d_model, d_inner), jnp.float32),
            "b1": jnp.zeros((1, d_inner), jnp.float32),
            "w2": scale * jax.random.normal(lk[5], (d_inner, d_model), jnp.float32),
            "b2": jnp.zeros((1, d_model), jnp.float32),
            "ln2_g": jnp.ones((1, d_model), jnp.float32),
            "ln2_b": jnp.zeros((1, d_model), jnp.float32),
        })
    return params


def pack_params(params, *, d_model, n_head, d_k, d_v):
    """Kernel layout: zero-pad to lane-dense widths, stack layers, bf16 matmul
    weights, and coalesce all per-layer vectors into one f32 slab.

    The zero padding (weight rows/cols, biases, gamma/beta) is what keeps the
    padded lanes of the running activation exactly zero through every layer —
    do not replace it with anything that perturbs those zeros.
    """
    layers = params["layers"]
    d_inner = layers[0]["w1"].shape[1]
    Dp = _round_up(d_model, LANE)
    HKp = _round_up(n_head * d_k, LANE)
    HVp = _round_up(n_head * d_v, LANE)
    Fp = _round_up(d_inner, LANE)
    W = max(HKp, HVp, Dp, Fp)

    def pad2(a, rows, cols):
        return jnp.zeros((rows, cols), jnp.float32).at[:a.shape[0], :a.shape[1]].set(a)

    def stack_w(name, rows, cols):
        return jnp.stack([pad2(lyr[name], rows, cols) for lyr in layers]).astype(jnp.bfloat16)

    def vec_for_layer(lyr):
        v = jnp.zeros((VEC_ROWS, W), jnp.float32)
        rows = [(ROW_BQ, lyr["bq"]), (ROW_BK, lyr["bk"]), (ROW_BV, lyr["bv"]),
                (ROW_BO, lyr["bo"]), (ROW_LN1G, lyr["ln1_g"]), (ROW_LN1B, lyr["ln1_b"]),
                (ROW_B1, lyr["b1"]), (ROW_B2, lyr["b2"]),
                (ROW_LN2G, lyr["ln2_g"]), (ROW_LN2B, lyr["ln2_b"])]
        for r, a in rows:
            a = a.reshape(-1)
            v = v.at[r, :a.shape[0]].set(a)
        return v

    return {
        "word_table": params["word_table"],        # (vocab, d_model) f32, row 0 == 0
        "level_table": params["level_table"],      # (n_levels, d_model) f32, row 0 == 0
        "enc_ln_g": params["enc_ln_g"],
        "enc_ln_b": params["enc_ln_b"],
        "wq": stack_w("wq", Dp, HKp), "wk": stack_w("wk", Dp, HKp),
        "wv": stack_w("wv", Dp, HVp), "wo": stack_w("wo", HVp, Dp),
        "w1": stack_w("w1", Dp, Fp), "w2": stack_w("w2", Fp, Dp),
        "vec": jnp.stack([vec_for_layer(lyr) for lyr in layers]),  # (n_layers,16,W) f32
    }


# ------------------------------- full forward ---------------------------------

def tree_encoder_forward(packed, src_seq, level_seq, mask,
                         *, d_model, n_head, d_k, d_v,
                         scale_emb=True, batch_tile=None):
    B, L = src_seq.shape
    n_layers, Dp, HKp = packed["wq"].shape
    HVp = packed["wv"].shape[2]
    Fp = packed["w1"].shape[2]
    W = packed["vec"].shape[2]

    # ---- glue (tiny, memory-bound): embedding gather + merge + initial LayerNorm,
    # then lane-pad to Dp so padded lanes are exactly zero everywhere downstream.
    # TODO(synk): the data-dependent embedding-table gathers stay in XLA; a Pallas
    # version would need scalar-prefetched token ids driving DMA row gathers.
    x = jnp.take(packed["word_table"], src_seq, axis=0)
    if scale_emb:
        x = x * (d_model ** 0.5)
    x = x + jnp.take(packed["level_table"], level_seq, axis=0)
    x = _layernorm(x, packed["enc_ln_g"], packed["enc_ln_b"])
    x0 = jnp.pad(x, ((0, 0), (0, 0), (0, Dp - d_model)))
    maskf = mask.astype(jnp.float32)

    # ---- generation-aware VMEM budget and batch-tile selection -----------------
    stream_keys = ("wq", "wk", "wv", "wo", "w1", "w2", "vec")
    per_layer_bytes = sum(_bytes(packed[k]) // n_layers for k in stream_keys)
    vmem_cap = _vmem_capacity_bytes()               # 64 MiB on v7x, 128 MiB v5e/v6e
    budget = int(0.55 * vmem_cap)

    def tile_bytes(bt):
        act = bt * L * Dp * 4
        resident = 2 * act + 2 * bt * L * 4         # x0 + mask blocks (double-buffered)
        out_blk = 2 * act                           # output block
        work = (3 * bt * L * max(HKp, HVp) * 4              # q, k, v
                + 4 * n_head * bt * L * L * 4               # score/exp/prob temps
                + bt * L * (Fp + HVp + 2 * Dp) * 4)         # ffn / ctx / LN temps
        return 2 * per_layer_bytes + resident + out_blk + work

    if batch_tile is None:
        divisors = [d for d in range(1, B + 1) if B % d == 0]
        fitting = [d for d in divisors if tile_bytes(d) <= budget] or [1]
        bt = max(fitting)
        # v7x megacore: prefer >= 2 batch tiles when the smaller tile still feeds the MXU
        if bt == B and B > 1:
            smaller = [d for d in fitting if d <= B // 2]
            if smaller and max(smaller) * L >= 256:
                bt = max(smaller)
    else:
        bt = batch_tile
    assert B % bt == 0, "batch_tile must divide batch"

    vmem_limit = int(min(max(tile_bytes(bt) + (4 << 20), 32 << 20), 0.7 * vmem_cap))

    grid = (B // bt, n_layers)
    bmap = lambda b, l: (b, 0, 0)   # per-batch-tile blocks, resident across layers
    wmap = lambda b, l: (l, 0, 0)   # per-layer weight slabs, streamed / double-buffered

    in_specs = [
        pl.BlockSpec((bt, L, Dp), bmap),            # x0 (aliased to the output)
        pl.BlockSpec((bt, 1, L), bmap),             # mask
        pl.BlockSpec((1, Dp, HKp), wmap),           # wq
        pl.BlockSpec((1, Dp, HKp), wmap),           # wk
        pl.BlockSpec((1, Dp, HVp), wmap),           # wv
        pl.BlockSpec((1, HVp, Dp), wmap),           # wo
        pl.BlockSpec((1, Dp, Fp), wmap),            # w1
        pl.BlockSpec((1, Fp, Dp), wmap),            # w2
        pl.BlockSpec((1, VEC_ROWS, W), wmap),       # coalesced biases + LN params
    ]
    out_spec = pl.BlockSpec((bt, L, Dp), bmap)

    # Advisory cost estimate so XLA schedules the surrounding gathers sensibly.
    flops_layer = (2 * L * Dp * (2 * HKp + HVp)                 # q, k, v projections
                   + n_head * 2 * L * L * (d_k + d_v)           # scores + context
                   + 2 * L * HVp * Dp                           # output projection
                   + 4 * L * Dp * Fp)                           # FFN
    weight_bytes = sum(_bytes(packed[k]) for k in stream_keys)
    cost = pl.CostEstimate(
        flops=int(B * n_layers * flops_layer),
        transcendentals=int(B * n_layers * n_head * L * L),
        bytes_accessed=int((B // bt) * weight_bytes + 2 * B * L * Dp * 4 + B * L * 4),
    )

    kernel = functools.partial(tree_encoder_kernel, n_head=n_head, d_k=d_k,
                               d_v=d_v, d_model=d_model)
    out = pl.pallas_call(
        kernel,
        out_shape=jax.ShapeDtypeStruct((B, L, Dp), jnp.float32),
        grid=grid,
        in_specs=in_specs,
        out_specs=out_spec,
        input_output_aliases={0: 0},                # x0 buffer becomes the output buffer
        compiler_params=pltpu.CompilerParams(
            dimension_semantics=("parallel", "arbitrary"),
            vmem_limit_bytes=vmem_limit),
        cost_estimate=cost,
    )(x0, maskf, packed["wq"], packed["wk"], packed["wv"], packed["wo"],
      packed["w1"], packed["w2"], packed["vec"])
    return out[:, :, :d_model]


# ------------------------- pure-JAX f32 reference -----------------------------

def tree_encoder_reference(params, src_seq, level_seq, mask,
                           *, d_model, n_head, d_k, d_v, scale_emb=True):
    x = jnp.take(params["word_table"], src_seq, axis=0)
    lev = jnp.take(params["level_table"], level_seq, axis=0)
    if scale_emb:
        x = x * (d_model ** 0.5)
    x = x + lev
    x = _layernorm(x, params["enc_ln_g"], params["enc_ln_b"])
    B, L, _ = x.shape
    m = mask[:, None, :, :]                        # (B, 1, 1, L)
    for p in params["layers"]:
        res = x
        q = (x @ p["wq"] + p["bq"]).reshape(B, L, n_head, d_k).transpose(0, 2, 1, 3)
        k = (x @ p["wk"] + p["bk"]).reshape(B, L, n_head, d_k).transpose(0, 2, 1, 3)
        v = (x @ p["wv"] + p["bv"]).reshape(B, L, n_head, d_v).transpose(0, 2, 1, 3)
        s = jnp.einsum('bhqd,bhkd->bhqk', q, k) / (d_k ** 0.5)
        s = jnp.where(m == 0.0, -1e9, s)
        a = jax.nn.softmax(s, axis=-1)
        o = jnp.einsum('bhqk,bhkd->bhqd', a, v).transpose(0, 2, 1, 3)
        o = o.reshape(B, L, n_head * d_v) @ p["wo"] + p["bo"]
        x = _layernorm(o + res, p["ln1_g"], p["ln1_b"])
        res2 = x
        f = jnp.maximum(x @ p["w1"] + p["b1"], 0.0) @ p["w2"] + p["b2"]
        x = _layernorm(f + res2, p["ln2_g"], p["ln2_b"])
    return x


# ----------------------------------- main --------------------------------------

if __name__ == "__main__":
    B, L = 2, 8
    d_model, d_inner = 32, 64
    n_head, d_k, d_v = 2, 16, 16
    n_layers = 2
    vocab, n_levels = 20, 10

    key = jax.random.PRNGKey(0)
    kp, ks, kl = jax.random.split(key, 3)

    params = init_params(kp, vocab=vocab, n_levels=n_levels, d_model=d_model,
                         d_inner=d_inner, n_head=n_head, d_k=d_k, d_v=d_v,
                         n_layers=n_layers)
    packed = pack_params(params, d_model=d_model, n_head=n_head, d_k=d_k, d_v=d_v)

    src_seq = jax.random.randint(ks, (B, L), 1, vocab, dtype=jnp.int32)
    level_seq = jax.random.randint(kl, (B, L), 1, n_levels, dtype=jnp.int32)
    # pad the tail of batch element 1 to exercise the attention mask
    src_seq = src_seq.at[1, L - 2:].set(0)
    level_seq = level_seq.at[1, L - 2:].set(0)
    mask = (src_seq != 0).astype(jnp.float32).reshape(B, 1, L)     # (B, 1, L)

    fwd = jax.jit(functools.partial(tree_encoder_forward, d_model=d_model,
                                    n_head=n_head, d_k=d_k, d_v=d_v,
                                    scale_emb=True))
    out = jax.block_until_ready(fwd(packed, src_seq, level_seq, mask))

    ref = tree_encoder_reference(params, src_seq, level_seq, mask,
                                 d_model=d_model, n_head=n_head, d_k=d_k, d_v=d_v)
    err = float(jnp.max(jnp.abs(out - ref)))

    assert out.shape == (B, L, d_model)
    assert bool(jnp.all(jnp.isfinite(out)))
    assert err < 0.1, f"mismatch vs f32 reference: max abs err = {err}"
    print("KERNEL_OK")
</pallas_src>

<mosaic_0001>
module attributes {stable_mosaic.version = 11 : i64} {
  func.func @tree_encoder_kernel(%arg0: i32, %arg1: i32, %arg2: memref<2x8x128xf32, #tpu.memory_space<vmem>>, %arg3: memref<2x1x8xf32, #tpu.memory_space<vmem>>, %arg4: memref<1x128x128xbf16, #tpu.memory_space<vmem>>, %arg5: memref<1x128x128xbf16, #tpu.memory_space<vmem>>, %arg6: memref<1x128x128xbf16, #tpu.memory_space<vmem>>, %arg7: memref<1x128x128xbf16, #tpu.memory_space<vmem>>, %arg8: memref<1x128x128xbf16, #tpu.memory_space<vmem>>, %arg9: memref<1x128x128xbf16, #tpu.memory_space<vmem>>, %arg10: memref<1x16x128xf32, #tpu.memory_space<vmem>>, %arg11: memref<2x8x128xf32, #tpu.memory_space<vmem>>) attributes {dimension_semantics = [#tpu.dimension_semantics<parallel>, #tpu.dimension_semantics<arbitrary>], iteration_bounds = array<i64: 1, 2>, scalar_prefetch = 0 : i64, scratch_operands = 0 : i64, tpu.core_type = #tpu.core_type<tc>, window_params = [{transform_indices = @transform_0, window_bounds = array<i64: 2, 8, 128>}, {transform_indices = @transform_1, window_bounds = array<i64: 2, 1, 8>}, {transform_indices = @transform_2, window_bounds = array<i64: 1, 128, 128>}, {transform_indices = @transform_3, window_bounds = array<i64: 1, 128, 128>}, {transform_indices = @transform_4, window_bounds = array<i64: 1, 128, 128>}, {transform_indices = @transform_5, window_bounds = array<i64: 1, 128, 128>}, {transform_indices = @transform_6, window_bounds = array<i64: 1, 128, 128>}, {transform_indices = @transform_7, window_bounds = array<i64: 1, 128, 128>}, {transform_indices = @transform_8, window_bounds = array<i64: 1, 16, 128>}, {transform_indices = @transform_9, window_bounds = array<i64: 2, 8, 128>}]} {
    %c0_i32 = arith.constant 0 : i32
    %0 = arith.cmpi eq, %arg1, %c0_i32 : i32
    %1 = arith.extui %0 : i1 to i32
    %c0_i32_0 = arith.constant 0 : i32
    %2 = arith.cmpi ne, %1, %c0_i32_0 : i32
    scf.if %2 {
      %c0_61 = arith.constant 0 : index
      %c0_62 = arith.constant 0 : index
      %c0_63 = arith.constant 0 : index
      %170 = vector.load %arg2[%c0_61, %c0_62, %c0_63] : memref<2x8x128xf32, #tpu.memory_space<vmem>>, vector<2x8x128xf32>
      %c0_64 = arith.constant 0 : index
      %c0_65 = arith.constant 0 : index
      %c0_66 = arith.constant 0 : index
      %171 = vector.load %arg11[%c0_64, %c0_65, %c0_66] : memref<2x8x128xf32, #tpu.memory_space<vmem>>, vector<2x8x128xf32>
      tpu.vector_store %arg11[%c0_64, %c0_65, %c0_66], %170 {strides = array<i32>} : memref<2x8x128xf32, #tpu.memory_space<vmem>>, vector<2x8x128xf32>,
    } else {
    }
    %c0 = arith.constant 0 : index
    %c0_1 = arith.constant 0 : index
    %c0_2 = arith.constant 0 : index
    %3 = vector.load %arg11[%c0, %c0_1, %c0_2] : memref<2x8x128xf32, #tpu.memory_space<vmem>>, vector<2x8x128xf32>
    %4 = vector.shape_cast %3 : vector<2x8x128xf32> to vector<16x128xf32>
    %5 = arith.truncf %4 : vector<16x128xf32> to vector<16x128xbf16>
    %c0_3 = arith.constant 0 : index
    %c0_4 = arith.constant 0 : index
    %c0_5 = arith.constant 0 : index
    %6 = vector.load %arg10[%c0_3, %c0_4, %c0_5] : memref<1x16x128xf32, #tpu.memory_space<vmem>>, vector<1x16x128xf32>
    %7 = vector.shape_cast %6 : vector<1x16x128xf32> to vector<16x128xf32>
    %c0_6 = arith.constant 0 : index
    %c0_7 = arith.constant 0 : index
    %c0_8 = arith.constant 0 : index
    %8 = vector.load %arg3[%c0_6, %c0_7, %c0_8] : memref<2x1x8xf32, #tpu.memory_space<vmem>>, vector<2x1x8xf32>
    %cst = arith.constant 1.000000e+00 : f32
    %9 = vector.broadcast %cst : f32 to vector<2x1x8xf32>
    %10 = arith.subf %8, %9 : vector<2x1x8xf32>
    %cst_9 = arith.constant 1.000000e+09 : f32
    %11 = vector.broadcast %cst_9 : f32 to vector<2x1x8xf32>
    %12 = arith.mulf %10, %11 : vector<2x1x8xf32>
    %c0_10 = arith.constant 0 : index
    %c0_11 = arith.constant 0 : index
    %c0_12 = arith.constant 0 : index
    %13 = vector.load %arg4[%c0_10, %c0_11, %c0_12] : memref<1x128x128xbf16, #tpu.memory_space<vmem>>, vector<1x128x128xbf16>
    %14 = vector.shape_cast %13 : vector<1x128x128xbf16> to vector<128x128xbf16>
    %cst_13 = arith.constant dense<0.000000e+00> : vector<16x128xf32>
    %15 = tpu.matmul %5, %14, %cst_13 {dimension_numbers = #tpu.dot_dimension_numbers<[1], [0], [0], [1], [0, 0, 1, 1], [], []>} : vector<16x128xbf16>, vector<128x128xbf16>, vector<16x128xf32> -> vector<16x128xf32>
    %16 = vector.extract_strided_slice %7 {offsets = [0, 0], sizes = [1, 128], strides = [1, 1]} : vector<16x128xf32> to vector<1x128xf32>
    %17 = vector.broadcast %16 : vector<1x128xf32> to vector<16x128xf32>
    %18 = arith.addf %15, %17 : vector<16x128xf32>
    %c0_14 = arith.constant 0 : index
    %c0_15 = arith.constant 0 : index
    %c0_16 = arith.constant 0 : index
    %19 = vector.load %arg5[%c0_14, %c0_15, %c0_16] : memref<1x128x128xbf16, #tpu.memory_space<vmem>>, vector<1x128x128xbf16>
    %20 = vector.shape_cast %19 : vector<1x128x128xbf16> to vector<128x128xbf16>
    %cst_17 = arith.constant dense<0.000000e+00> : vector<16x128xf32>
    %21 = tpu.matmul %5, %20, %cst_17 {dimension_numbers = #tpu.dot_dimension_numbers<[1], [0], [0], [1], [0, 0, 1, 1], [], []>} : vector<16x128xbf16>, vector<128x128xbf16>, vector<16x128xf32> -> vector<16x128xf32>
    %22 = vector.extract_strided_slice %7 {offsets = [1, 0], sizes = [1, 128], strides = [1, 1]} : vector<16x128xf32> to vector<1x128xf32>
    %23 = vector.broadcast %22 : vector<1x128xf32> to vector<16x128xf32>
    %24 = arith.addf %21, %23 : vector<16x128xf32>
    %c0_18 = arith.constant 0 : index
    %c0_19 = arith.constant 0 : index
    %c0_20 = arith.constant 0 : index
    %25 = vector.load %arg6[%c0_18, %c0_19, %c0_20] : memref<1x128x128xbf16, #tpu.memory_space<vmem>>, vector<1x128x128xbf16>
    %26 = vector.shape_cast %25 : vector<1x128x128xbf16> to vector<128x128xbf16>
    %cst_21 = arith.constant dense<0.000000e+00> : vector<16x128xf32>
    %27 = tpu.matmul %5, %26, %cst_21 {dimension_numbers = #tpu.dot_dimension_numbers<[1], [0], [0], [1], [0, 0, 1, 1], [], []>} : vector<16x128xbf16>, vector<128x128xbf16>, vector<16x128xf32> -> vector<16x128xf32>
    %28 = vector.extract_strided_slice %7 {offsets = [2, 0], sizes = [1, 128], strides = [1, 1]} : vector<16x128xf32> to vector<1x128xf32>
    %29 = vector.broadcast %28 : vector<1x128xf32> to vector<16x128xf32>
    %30 = arith.addf %27, %29 : vector<16x128xf32>
    %31 = vector.extract_strided_slice %18 {offsets = [0, 0], sizes = [16, 16], strides = [1, 1]} : vector<16x128xf32> to vector<16x16xf32>
    %32 = vector.shape_cast %31 : vector<16x16xf32> to vector<2x8x16xf32>
    %33 = arith.truncf %32 : vector<2x8x16xf32> to vector<2x8x16xbf16>
    %34 = vector.extract_strided_slice %24 {offsets = [0, 0], sizes = [16, 16], strides = [1, 1]} : vector<16x128xf32> to vector<16x16xf32>
    %35 = vector.shape_cast %34 : vector<16x16xf32> to vector<2x8x16xf32>
    %36 = arith.truncf %35 : vector<2x8x16xf32> to vector<2x8x16xbf16>
    %37 = vector.extract_strided_slice %30 {offsets = [0, 0], sizes = [16, 16], strides = [1, 1]} : vector<16x128xf32> to vector<16x16xf32>
    %38 = vector.shape_cast %37 : vector<16x16xf32> to vector<2x8x16xf32>
    %39 = arith.truncf %38 : vector<2x8x16xf32> to vector<2x8x16xbf16>
    "tpu.trace_start"() <{level = 10 : i32, message = "bqd,bkd->bqk"}> : () -> ()
    %cst_22 = arith.constant dense<0.000000e+00> : vector<2x8x8xf32>
    %40 = tpu.matmul %33, %36, %cst_22 {dimension_numbers = #tpu.dot_dimension_numbers<[2], [2], [1], [1], [0, 0, 0, 1, 1, 1], [0], [0]>} : vector<2x8x16xbf16>, vector<2x8x16xbf16>, vector<2x8x8xf32> -> vector<2x8x8xf32>
    "tpu.trace_stop"() : () -> ()
    %cst_23 = arith.constant 2.500000e-01 : f32
    %41 = vector.broadcast %cst_23 : f32 to vector<2x8x8xf32>
    %42 = arith.mulf %40, %41 : vector<2x8x8xf32>
    %43 = vector.broadcast %8 : vector<2x1x8xf32> to vector<2x8x8xf32>
    %44 = arith.mulf %42, %43 : vector<2x8x8xf32>
    %45 = vector.broadcast %12 : vector<2x1x8xf32> to vector<2x8x8xf32>
    %46 = arith.addf %44, %45 : vector<2x8x8xf32>
    %cst_24 = arith.constant dense<0xFF800000> : vector<2x8xf32>
    %47 = vector.multi_reduction <maximumf>, %46, %cst_24 [2] : vector<2x8x8xf32> to vector<2x8xf32>
    %48 = vector.shape_cast %47 : vector<2x8xf32> to vector<2x8x1xf32>
    %49 = vector.broadcast %48 : vector<2x8x1xf32> to vector<2x8x8xf32>
    %50 = arith.subf %46, %49 : vector<2x8x8xf32>
    %51 = math.exp %50 : vector<2x8x8xf32>
    %cst_25 = arith.constant dense<0.000000e+00> : vector<2x8xf32>
    %52 = vector.multi_reduction <add>, %51, %cst_25 [2] : vector<2x8x8xf32> to vector<2x8xf32>
    %53 = vector.shape_cast %52 : vector<2x8xf32> to vector<2x8x1xf32>
    %54 = tpu.reciprocal %53 {approx = true} : vector<2x8x1xf32> -> vector<2x8x1xf32>
    %55 = vector.broadcast %54 : vector<2x8x1xf32> to vector<2x8x8xf32>
    %56 = arith.mulf %51, %55 : vector<2x8x8xf32>
    %57 = arith.truncf %56 : vector<2x8x8xf32> to vector<2x8x8xbf16>
    "tpu.trace_start"() <{level = 10 : i32, message = "bqk,bkd->bqd"}> : () -> ()
    %cst_26 = arith.constant dense<0.000000e+00> : vector<2x8x16xf32>
    %58 = tpu.matmul %57, %39, %cst_26 {dimension_numbers = #tpu.dot_dimension_numbers<[2], [1], [1], [2], [0, 0, 0, 1, 1, 2], [0], [0]>} : vector<2x8x8xbf16>, vector<2x8x16xbf16>, vector<2x8x16xf32> -> vector<2x8x16xf32>
    "tpu.trace_stop"() : () -> ()
    %59 = vector.shape_cast %58 : vector<2x8x16xf32> to vector<16x16xf32>
    %60 = vector.extract_strided_slice %18 {offsets = [0, 16], sizes = [16, 16], strides = [1, 1]} : vector<16x128xf32> to vector<16x16xf32>
    %61 = vector.shape_cast %60 : vector<16x16xf32> to vector<2x8x16xf32>
    %62 = arith.truncf %61 : vector<2x8x16xf32> to vector<2x8x16xbf16>
    %63 = vector.extract_strided_slice %24 {offsets = [0, 16], sizes = [16, 16], strides = [1, 1]} : vector<16x128xf32> to vector<16x16xf32>
    %64 = vector.shape_cast %63 : vector<16x16xf32> to vector<2x8x16xf32>
    %65 = arith.truncf %64 : vector<2x8x16xf32> to vector<2x8x16xbf16>
    %66 = vector.extract_strided_slice %30 {offsets = [0, 16], sizes = [16, 16], strides = [1, 1]} : vector<16x128xf32> to vector<16x16xf32>
    %67 = vector.shape_cast %66 : vector<16x16xf32> to vector<2x8x16xf32>
    %68 = arith.truncf %67 : vector<2x8x16xf32> to vector<2x8x16xbf16>
    "tpu.trace_start"() <{level = 10 : i32, message = "bqd,bkd->bqk"}> : () -> ()
    %cst_27 = arith.constant dense<0.000000e+00> : vector<2x8x8xf32>
    %69 = tpu.matmul %62, %65, %cst_27 {dimension_numbers = #tpu.dot_dimension_numbers<[2], [2], [1], [1], [0, 0, 0, 1, 1, 1], [0], [0]>} : vector<2x8x16xbf16>, vector<2x8x16xbf16>, vector<2x8x8xf32> -> vector<2x8x8xf32>
    "tpu.trace_stop"() : () -> ()
    %cst_28 = arith.constant 2.500000e-01 : f32
    %70 = vector.broadcast %cst_28 : f32 to vector<2x8x8xf32>
    %71 = arith.mulf %69, %70 : vector<2x8x8xf32>
    %72 = vector.broadcast %8 : vector<2x1x8xf32> to vector<2x8x8xf32>
    %73 = arith.mulf %71, %72 : vector<2x8x8xf32>
    %74 = vector.broadcast %12 : vector<2x1x8xf32> to vector<2x8x8xf32>
    %75 = arith.addf %73, %74 : vector<2x8x8xf32>
    %cst_29 = arith.constant dense<0xFF800000> : vector<2x8xf32>
    %76 = vector.multi_reduction <maximumf>, %75, %cst_29 [2] : vector<2x8x8xf32> to vector<2x8xf32>
    %77 = vector.shape_cast %76 : vector<2x8xf32> to vector<2x8x1xf32>
    %78 = vector.broadcast %77 : vector<2x8x1xf32> to vector<2x8x8xf32>
    %79 = arith.subf %75, %78 : vector<2x8x8xf32>
    %80 = math.exp %79 : vector<2x8x8xf32>
    %cst_30 = arith.constant dense<0.000000e+00> : vector<2x8xf32>
    %81 = vector.multi_reduction <add>, %80, %cst_30 [2] : vector<2x8x8xf32> to vector<2x8xf32>
    %82 = vector.shape_cast %81 : vector<2x8xf32> to vector<2x8x1xf32>
    %83 = tpu.reciprocal %82 {approx = true} : vector<2x8x1xf32> -> vector<2x8x1xf32>
    %84 = vector.broadcast %83 : vector<2x8x1xf32> to vector<2x8x8xf32>
    %85 = arith.mulf %80, %84 : vector<2x8x8xf32>
    %86 = arith.truncf %85 : vector<2x8x8xf32> to vector<2x8x8xbf16>
    "tpu.trace_start"() <{level = 10 : i32, message = "bqk,bkd->bqd"}> : () -> ()
    %cst_31 = arith.constant dense<0.000000e+00> : vector<2x8x16xf32>
    %87 = tpu.matmul %86, %68, %cst_31 {dimension_numbers = #tpu.dot_dimension_numbers<[2], [1], [1], [2], [0, 0, 0, 1, 1, 2], [0], [0]>} : vector<2x8x8xbf16>, vector<2x8x16xbf16>, vector<2x8x16xf32> -> vector<2x8x16xf32>
    "tpu.trace_stop"() : () -> ()
    %88 = vector.shape_cast %87 : vector<2x8x16xf32> to vector<16x16xf32>
    %cst_32 = arith.constant 0.000000e+00 : f32
    %89 = vector.broadcast %cst_32 : f32 to vector<16x96xf32>
    %90 = tpu.concatenate %59, %88, %89 in 1 : vector<16x16xf32>, vector<16x16xf32>, vector<16x96xf32> -> vector<16x128xf32>
    %91 = arith.truncf %90 : vector<16x128xf32> to vector<16x128xbf16>
    %c0_33 = arith.constant 0 : index
    %c0_34 = arith.constant 0 : index
    %c0_35 = arith.constant 0 : index
    %92 = vector.load %arg7[%c0_33, %c0_34, %c0_35] : memref<1x128x128xbf16, #tpu.memory_space<vmem>>, vector<1x128x128xbf16>
    %93 = vector.shape_cast %92 : vector<1x128x128xbf16> to vector<128x128xbf16>
    %cst_36 = arith.constant dense<0.000000e+00> : vector<16x128xf32>
    %94 = tpu.matmul %91, %93, %cst_36 {dimension_numbers = #tpu.dot_dimension_numbers<[1], [0], [0], [1], [0, 0, 1, 1], [], []>} : vector<16x128xbf16>, vector<128x128xbf16>, vector<16x128xf32> -> vector<16x128xf32>
    %95 = vector.extract_strided_slice %7 {offsets = [3, 0], sizes = [1, 128], strides = [1, 1]} : vector<16x128xf32> to vector<1x128xf32>
    %96 = vector.broadcast %95 : vector<1x128xf32> to vector<16x128xf32>
    %97 = arith.addf %94, %96 : vector<16x128xf32>
    %98 = arith.addf %97, %4 : vector<16x128xf32>
    %99 = vector.extract_strided_slice %7 {offsets = [4, 0], sizes = [1, 128], strides = [1, 1]} : vector<16x128xf32> to vector<1x128xf32>
    %100 = vector.extract_strided_slice %7 {offsets = [5, 0], sizes = [1, 128], strides = [1, 1]} : vector<16x128xf32> to vector<1x128xf32>
    %cst_37 = arith.constant dense<0.000000e+00> : vector<16xf32>
    %101 = vector.multi_reduction <add>, %98, %cst_37 [1] : vector<16x128xf32> to vector<16xf32>
    %102 = vector.shape_cast %101 : vector<16xf32> to vector<16x1xf32>
    %cst_38 = arith.constant 3.125000e-02 : f32
    %103 = vector.broadcast %cst_38 : f32 to vector<16x1xf32>
    %104 = arith.mulf %102, %103 : vector<16x1xf32>
    %105 = vector.broadcast %104 : vector<16x1xf32> to vector<16x128xf32>
    %106 = arith.subf %98, %105 : vector<16x128xf32>
    %107 = arith.mulf %106, %106 : vector<16x128xf32>
    %cst_39 = arith.constant dense<0.000000e+00> : vector<16xf32>
    %108 = vector.multi_reduction <add>, %107, %cst_39 [1] : vector<16x128xf32> to vector<16xf32>
    %109 = vector.shape_cast %108 : vector<16xf32> to vector<16x1xf32>
    %cst_40 = arith.constant 9.600000e+01 : f32
    %110 = vector.broadcast %cst_40 : f32 to vector<16x1xf32>
    %111 = arith.mulf %110, %104 : vector<16x1xf32>
    %112 = arith.mulf %111, %104 : vector<16x1xf32>
    %113 = arith.subf %109, %112 : vector<16x1xf32>
    %cst_41 = arith.constant 3.125000e-02 : f32
    %114 = vector.broadcast %cst_41 : f32 to vector<16x1xf32>
    %115 = arith.mulf %113, %114 : vector<16x1xf32>
    %cst_42 = arith.constant 9.99999997E-7 : f32
    %116 = vector.broadcast %cst_42 : f32 to vector<16x1xf32>
    %117 = arith.addf %115, %116 : vector<16x1xf32>
    %118 = math.rsqrt %117 : vector<16x1xf32>
    %119 = vector.broadcast %118 : vector<16x1xf32> to vector<16x128xf32>
    %120 = arith.mulf %106, %119 : vector<16x128xf32>
    %121 = vector.broadcast %99 : vector<1x128xf32> to vector<16x128xf32>
    %122 = arith.mulf %120, %121 : vector<16x128xf32>
    %123 = vector.broadcast %100 : vector<1x128xf32> to vector<16x128xf32>
    %124 = arith.addf %122, %123 : vector<16x128xf32>
    %125 = arith.truncf %124 : vector<16x128xf32> to vector<16x128xbf16>
    %c0_43 = arith.constant 0 : index
    %c0_44 = arith.constant 0 : index
    %c0_45 = arith.constant 0 : index
    %126 = vector.load %arg8[%c0_43, %c0_44, %c0_45] : memref<1x128x128xbf16, #tpu.memory_space<vmem>>, vector<1x128x128xbf16>
    %127 = vector.shape_cast %126 : vector<1x128x128xbf16> to vector<128x128xbf16>
    %cst_46 = arith.constant dense<0.000000e+00> : vector<16x128xf32>
    %128 = tpu.matmul %125, %127, %cst_46 {dimension_numbers = #tpu.dot_dimension_numbers<[1], [0], [0], [1], [0, 0, 1, 1], [], []>} : vector<16x128xbf16>, vector<128x128xbf16>, vector<16x128xf32> -> vector<16x128xf32>
    %129 = vector.extract_strided_slice %7 {offsets = [6, 0], sizes = [1, 128], strides = [1, 1]} : vector<16x128xf32> to vector<1x128xf32>
    %130 = vector.broadcast %129 : vector<1x128xf32> to vector<16x128xf32>
    %131 = arith.addf %128, %130 : vector<16x128xf32>
    %cst_47 = arith.constant 0.000000e+00 : f32
    %132 = vector.broadcast %cst_47 : f32 to vector<16x128xf32>
    %133 = arith.maximumf %131, %132 : vector<16x128xf32>
    %134 = arith.truncf %133 : vector<16x128xf32> to vector<16x128xbf16>
    %c0_48 = arith.constant 0 : index
    %c0_49 = arith.constant 0 : index
    %c0_50 = arith.constant 0 : index
    %135 = vector.load %arg9[%c0_48, %c0_49, %c0_50] : memref<1x128x128xbf16, #tpu.memory_space<vmem>>, vector<1x128x128xbf16>
    %136 = vector.shape_cast %135 : vector<1x128x128xbf16> to vector<128x128xbf16>
    %cst_51 = arith.constant dense<0.000000e+00> : vector<16x128xf32>
    %137 = tpu.matmul %134, %136, %cst_51 {dimension_numbers = #tpu.dot_dimension_numbers<[1], [0], [0], [1], [0, 0, 1, 1], [], []>} : vector<16x128xbf16>, vector<128x128xbf16>, vector<16x128xf32> -> vector<16x128xf32>
    %138 = vector.extract_strided_slice %7 {offsets = [7, 0], sizes = [1, 128], strides = [1, 1]} : vector<16x128xf32> to vector<1x128xf32>
    %139 = vector.broadcast %138 : vector<1x128xf32> to vector<16x128xf32>
    %140 = arith.addf %137, %139 : vector<16x128xf32>
    %141 = arith.addf %140, %124 : vector<16x128xf32>
    %142 = vector.extract_strided_slice %7 {offsets = [8, 0], sizes = [1, 128], strides = [1, 1]} : vector<16x128xf32> to vector<1x128xf32>
    %143 = vector.extract_strided_slice %7 {offsets = [9, 0], sizes = [1, 128], strides = [1, 1]} : vector<16x128xf32> to vector<1x128xf32>
    %cst_52 = arith.constant dense<0.000000e+00> : vector<16xf32>
    %144 = vector.multi_reduction <add>, %141, %cst_52 [1] : vector<16x128xf32> to vector<16xf32>
    %145 = vector.shape_cast %144 : vector<16xf32> to vector<16x1xf32>
    %cst_53 = arith.constant 3.125000e-02 : f32
    %146 = vector.broadcast %cst_53 : f32 to vector<16x1xf32>
    %147 = arith.mulf %145, %146 : vector<16x1xf32>
    %148 = vector.broadcast %147 : vector<16x1xf32> to vector<16x128xf32>
    %149 = arith.subf %141, %148 : vector<16x128xf32>
    %150 = arith.mulf %149, %149 : vector<16x128xf32>
    %cst_54 = arith.constant dense<0.000000e+00> : vector<16xf32>
    %151 = vector.multi_reduction <add>, %150, %cst_54 [1] : vector<16x128xf32> to vector<16xf32>
    %152 = vector.shape_cast %151 : vector<16xf32> to vector<16x1xf32>
    %cst_55 = arith.constant 9.600000e+01 : f32
    %153 = vector.broadcast %cst_55 : f32 to vector<16x1xf32>
    %154 = arith.mulf %153, %147 : vector<16x1xf32>
    %155 = arith.mulf %154, %147 : vector<16x1xf32>
    %156 = arith.subf %152, %155 : vector<16x1xf32>
    %cst_56 = arith.constant 3.125000e-02 : f32
    %157 = vector.broadcast %cst_56 : f32 to vector<16x1xf32>
    %158 = arith.mulf %156, %157 : vector<16x1xf32>
    %cst_57 = arith.constant 9.99999997E-7 : f32
    %159 = vector.broadcast %cst_57 : f32 to vector<16x1xf32>
    %160 = arith.addf %158, %159 : vector<16x1xf32>
    %161 = math.rsqrt %160 : vector<16x1xf32>
    %162 = vector.broadcast %161 : vector<16x1xf32> to vector<16x128xf32>
    %163 = arith.mulf %149, %162 : vector<16x128xf32>
    %164 = vector.broadcast %142 : vector<1x128xf32> to vector<16x128xf32>
    %165 = arith.mulf %163, %164 : vector<16x128xf32>
    %166 = vector.broadcast %143 : vector<1x128xf32> to vector<16x128xf32>
    %167 = arith.addf %165, %166 : vector<16x128xf32>
    %168 = vector.shape_cast %167 : vector<16x128xf32> to vector<2x8x128xf32>
    %c0_58 = arith.constant 0 : index
    %c0_59 = arith.constant 0 : index
    %c0_60 = arith.constant 0 : index
    %169 = vector.load %arg11[%c0_58, %c0_59, %c0_60] : memref<2x8x128xf32, #tpu.memory_space<vmem>>, vector<2x8x128xf32>
    tpu.vector_store %arg11[%c0_58, %c0_59, %c0_60], %168 {strides = array<i32>} : memref<2x8x128xf32, #tpu.memory_space<vmem>>, vector<2x8x128xf32>,
    return
  }
  func.func @transform_0(%arg0: i32, %arg1: i32) -> (i32, i32, i32) {
    %c0_i32 = arith.constant 0 : i32
    %c0_i32_0 = arith.constant 0 : i32
    %c0_i32_1 = arith.constant 0 : i32
    return %arg0, %c0_i32, %c0_i32_0 : i32, i32, i32
  }
  func.func @transform_1(%arg0: i32, %arg1: i32) -> (i32, i32, i32) {
    %c0_i32 = arith.constant 0 : i32
    %c0_i32_0 = arith.constant 0 : i32
    %c0_i32_1 = arith.constant 0 : i32
    return %arg0, %c0_i32, %c0_i32_0 : i32, i32, i32
  }
  func.func @transform_2(%arg0: i32, %arg1: i32) -> (i32, i32, i32) {
    %c0_i32 = arith.constant 0 : i32
    %c0_i32_0 = arith.constant 0 : i32
    %c0_i32_1 = arith.constant 0 : i32
    return %arg1, %c0_i32, %c0_i32_0 : i32, i32, i32
  }
  func.func @transform_3(%arg0: i32, %arg1: i32) -> (i32, i32, i32) {
    %c0_i32 = arith.constant 0 : i32
    %c0_i32_0 = arith.constant 0 : i32
    %c0_i32_1 = arith.constant 0 : i32
    return %arg1, %c0_i32, %c0_i32_0 : i32, i32, i32
  }
  func.func @transform_4(%arg0: i32, %arg1: i32) -> (i32, i32, i32) {
    %c0_i32 = arith.constant 0 : i32
    %c0_i32_0 = arith.constant 0 : i32
    %c0_i32_1 = arith.constant 0 : i32
    return %arg1, %c0_i32, %c0_i32_0 : i32, i32, i32
  }
  func.func @transform_5(%arg0: i32, %arg1: i32) -> (i32, i32, i32) {
    %c0_i32 = arith.constant 0 : i32
    %c0_i32_0 = arith.constant 0 : i32
    %c0_i32_1 = arith.constant 0 : i32
    return %arg1, %c0_i32, %c0_i32_0 : i32, i32, i32
  }
  func.func @transform_6(%arg0: i32, %arg1: i32) -> (i32, i32, i32) {
    %c0_i32 = arith.constant 0 : i32
    %c0_i32_0 = arith.constant 0 : i32
    %c0_i32_1 = arith.constant 0 : i32
    return %arg1, %c0_i32, %c0_i32_0 : i32, i32, i32
  }
  func.func @transform_7(%arg0: i32, %arg1: i32) -> (i32, i32, i32) {
    %c0_i32 = arith.constant 0 : i32
    %c0_i32_0 = arith.constant 0 : i32
    %c0_i32_1 = arith.constant 0 : i32
    return %arg1, %c0_i32, %c0_i32_0 : i32, i32, i32
  }
  func.func @transform_8(%arg0: i32, %arg1: i32) -> (i32, i32, i32) {
    %c0_i32 = arith.constant 0 : i32
    %c0_i32_0 = arith.constant 0 : i32
    %c0_i32_1 = arith.constant 0 : i32
    return %arg1, %c0_i32, %c0_i32_0 : i32, i32, i32
  }
  func.func @transform_9(%arg0: i32, %arg1: i32) -> (i32, i32, i32) {
    %c0_i32 = arith.constant 0 : i32
    %c0_i32_0 = arith.constant 0 : i32
    %c0_i32_1 = arith.constant 0 : i32
    return %arg0, %c0_i32, %c0_i32_0 : i32, i32, i32
  }
}

</mosaic_0001>

<llo_original>
// kernel: tree_encoder_forward.1
$region0: #{tree_encoder_forward.1}
  #allocation0 [shape = 'u32[]', space=smem, size = 0x4, offset = 0x4, fixed_abs, tag = 'smem constant byte address 0x4 - core index']
  #allocation1 [shape = 'u32[72,128]{1,0:T(1,128)}', space=vmem, size = 0x9000, scoped, tag = 'internal scratch']
  %s0 = inlined_call_operand.vmem [shape: f32[2,8,128], index: 0, kind: input, shape index: {}, may-alias: {0,9}]
  %s1 = inlined_call_operand.vmem [shape: f32[2,1,8], index: 1, kind: input, shape index: {}]
  %s2 = inlined_call_operand.vmem [shape: bf16[2,128,128], index: 2, kind: input, shape index: {}]
  %s3 = inlined_call_operand.vmem [shape: bf16[2,128,128], index: 3, kind: input, shape index: {}]
  %s4 = inlined_call_operand.vmem [shape: bf16[2,128,128], index: 4, kind: input, shape index: {}]
  %s5 = inlined_call_operand.hbm [shape: bf16[2,128,128], index: 5, kind: input, shape index: {}]
  %s6 = inlined_call_operand.hbm [shape: bf16[2,128,128], index: 6, kind: input, shape index: {}]
  %s7 = inlined_call_operand.hbm [shape: bf16[2,128,128], index: 7, kind: input, shape index: {}]
  %s8 = inlined_call_operand.vmem [shape: f32[2,16,128], index: 8, kind: input, shape index: {}]
  %s9 = inlined_call_operand.vmem [shape: f32[2,8,128], index: 9, kind: output, shape index: {}, may-alias: {0,9}]
  %s10 = sld [smem:[#allocation0]]
  $region85: #{tree_encoder_forward.1} parent=0
    _
  %s12 = ssub.s32 1, %s10
  %s13 = scalar_select 0, %s12, %s10
  $region1: #{tree_encoder_forward.1} parent=0
    #allocation2 [shape = 'u8[65536]{0}', space=vmem, size = 0x10000, scoped, tag = 'input window, operand 5']
    #allocation3 [shape = 's32[2]{0}', space=sflag, size = 0x8, scoped, tag = 'scoped memory for tree_encoder_forward.1']
    #allocation4 [shape = 'u8[65536]{0}', space=vmem, size = 0x10000, scoped, tag = 'input window, operand 6']
    #allocation5 [shape = 's32[2]{0}', space=sflag, size = 0x8, scoped, tag = 'scoped memory for tree_encoder_forward.1']
    #allocation6 [shape = 'u8[65536]{0}', space=vmem, size = 0x10000, scoped, tag = 'input window, operand 7']
    %14 = vsyncpa [#allocation3], 0
    %s15 = scalar_lea.sflag [#allocation3], 1
    %16 = vsyncpa %s15, 0
    %17 = vsyncpa [#allocation5], 0
    %s18 = scalar_lea.sflag [#allocation5], 1
    %19 = vsyncpa %s18, 0
    loop: start=0, step=1, limit=4
    $region2: #{tree_encoder_forward.1} parent=1 // loop_pre_header
      _
    $region3: #{tree_encoder_forward.1} parent=1 // loop_header
      %s21 = sphi 0, %s25
      %p22 = scmp.ge.s32.totalorder %s21, 4
      %s28 = sphi 0, %s40
      %s29 = sphi 0, %s36
      %s30 = sphi 0, %s28
      %s31 = sphi 0, %s29
      %s32 = sphi 0, %s30
      %s33 = sphi 0, %s31
      %s43 = sphi 0, %s45
      %s46 = sphi 0, %s43
      %s47 = sphi 0, %s46
      %s63 = sphi 0, %s47
      %s69 = sphi 0, %s71
      %s72 = sphi 0, %s69
      %s73 = sphi 0, %s72
      %s89 = sphi 0, %s73
      %s95 = sphi 0, %s97
      %s98 = sphi 0, %s95
      %s99 = sphi 0, %s98
      %s115 = sphi 0, %s99
      %s121 = sphi 0, %s123
      %s124 = sphi 0, %s121
      %s125 = sphi 0, %s124
      %s141 = sphi 0, %s125
      %s147 = sphi 0, %s149
      %s150 = sphi 0, %s147
      %s151 = sphi 0, %s150
      %s167 = sphi 0, %s151
      %s173 = sphi 0, %s175
      %s176 = sphi 0, %s173
      %s177 = sphi 0, %s176
      %s193 = sphi 0, %s177
      %s199 = sphi 0, %s201
      %s202 = sphi 0, %s199
      %s203 = sphi 0, %s202
      %s219 = sphi 0, %s203
      %s225 = sphi 0, %s227
      %s228 = sphi 0, %s225
      %s229 = sphi 0, %s228
      %s245 = sphi 0, %s229
      %s251 = sphi 0, %s253
      %s254 = sphi 0, %s251
      %s255 = sphi 0, %s254
      %s271 = sphi 0, %s255
      %s277 = sphi 0, %s279
      %s280 = sphi 0, %s277
      %s281 = sphi 0, %s280
      %s297 = sphi 0, %s281
    $region4: #{tree_encoder_forward.1} parent=1 // loop_header_branch
      %24 = sbr.rel (%p22) target = $region8
    $region5: #{tree_encoder_forward.1} parent=1 // loop_body
      %s26 = ssub.s32 %s21, 1
      %s27 = ssub.s32 %s21, 2
      %s34 = sadd.s32 1, %s29
      %p35 = scmp.ge.s32.totalorder %s34, 2
      %s36 = scalar_select %p35, 0, %s34
      %s37 = sadd.s32 1, %s28
      %s38 = scalar_select %p35, %s37, %s28
      %p39 = scmp.ge.s32.totalorder %s38, 1
      %s40 = scalar_select %p39, 0, %s38
      %s41 = ssub.s32 %s28, %s40
      %p42 = scmp.eq.s32.totalorder %s41, 0
      %s44 = sadd.s32 %s43, 1
      %s45 = scalar_select %p42, %s43, %s44
      %p48 = pneg %p42
      %p49 = scmp.eq.s32.totalorder %s21, 1
      %p50 = por %p48, %p49
      %p51 = scmp.ne.s32.totalorder %s43, %s46
      %p52 = scmp.eq.s32.totalorder %s21, 0
      %p53 = por %p51, %p52
      %p54 = scmp.ne.s32.totalorder %s43, %s46
      %p55 = scmp.eq.s32.totalorder %s26, 1
      %p56 = por %p54, %p55
      %p57 = scmp.ne.s32.totalorder %s46, %s47
      %p58 = scmp.eq.s32.totalorder %s26, 0
      %p59 = por %p57, %p58
      %p60 = scmp.ne.s32.totalorder %s46, %s47
      %p61 = scmp.eq.s32.totalorder %s27, 1
      %p62 = por %p60, %p61
      %p64 = scmp.ne.s32.totalorder %s47, %s63
      %p65 = scmp.eq.s32.totalorder %s27, 0
      %p66 = por %p64, %p65
      %s67 = ssub.s32 %s28, %s40
      %p68 = scmp.eq.s32.totalorder %s67, 0
      %s70 = sadd.s32 %s69, 1
      %s71 = scalar_select %p68, %s69, %s70
      %p74 = pneg %p68
      %p75 = scmp.eq.s32.totalorder %s21, 1
      %p76 = por %p74, %p75
      %p77 = scmp.ne.s32.totalorder %s69, %s72
      %p78 = scmp.eq.s32.totalorder %s21, 0
      %p79 = por %p77, %p78
      %p80 = scmp.ne.s32.totalorder %s69, %s72
      %p81 = scmp.eq.s32.totalorder %s26, 1
      %p82 = por %p80, %p81
      %p83 = scmp.ne.s32.totalorder %s72, %s73
      %p84 = scmp.eq.s32.totalorder %s26, 0
      %p85 = por %p83, %p84
      %p86 = scmp.ne.s32.totalorder %s72, %s73
      %p87 = scmp.eq.s32.totalorder %s27, 1
      %p88 = por %p86, %p87
      %p90 = scmp.ne.s32.totalorder %s73, %s89
      %p91 = scmp.eq.s32.totalorder %s27, 0
      %p92 = por %p90, %p91
      %s93 = ssub.s32 %s29, %s36
      %p94 = scmp.eq.s32.totalorder %s93, 0
      %s96 = sadd.s32 %s95, 1
      %s97 = scalar_select %p94, %s95, %s96
      %p100 = pneg %p94
      %p101 = scmp.eq.s32.totalorder %s21, 1
      %p102 = por %p100, %p101
      %p103 = scmp.ne.s32.totalorder %s95, %s98
      %p104 = scmp.eq.s32.totalorder %s21, 0
      %p105 = por %p103, %p104
      %p106 = scmp.ne.s32.totalorder %s95, %s98
      %p107 = scmp.eq.s32.totalorder %s26, 1
      %p108 = por %p106, %p107
      %p109 = scmp.ne.s32.totalorder %s98, %s99
      %p110 = scmp.eq.s32.totalorder %s26, 0
      %p111 = por %p109, %p110
      %p112 = scmp.ne.s32.totalorder %s98, %s99
      %p113 = scmp.eq.s32.totalorder %s27, 1
      %p114 = por %p112, %p113
      %p116 = scmp.ne.s32.totalorder %s99, %s115
      %p117 = scmp.eq.s32.totalorder %s27, 0
      %p118 = por %p116, %p117
      %s119 = ssub.s32 %s29, %s36
      %p120 = scmp.eq.s32.totalorder %s119, 0
      %s122 = sadd.s32 %s121, 1
      %s123 = scalar_select %p120, %s121, %s122
      %p126 = pneg %p120
      %p127 = scmp.eq.s32.totalorder %s21, 1
      %p128 = por %p126, %p127
      %p129 = scmp.ne.s32.totalorder %s121, %s124
      %p130 = scmp.eq.s32.totalorder %s21, 0
      %p131 = por %p129, %p130
      %p132 = scmp.ne.s32.totalorder %s121, %s124
      %p133 = scmp.eq.s32.totalorder %s26, 1
      %p134 = por %p132, %p133
      %p135 = scmp.ne.s32.totalorder %s124, %s125
      %p136 = scmp.eq.s32.totalorder %s26, 0
      %p137 = por %p135, %p136
      %p138 = scmp.ne.s32.totalorder %s124, %s125
      %p139 = scmp.eq.s32.totalorder %s27, 1
      %p140 = por %p138, %p139
      %p142 = scmp.ne.s32.totalorder %s125, %s141
      %p143 = scmp.eq.s32.totalorder %s27, 0
      %p144 = por %p142, %p143
      %s145 = ssub.s32 %s29, %s36
      %p146 = scmp.eq.s32.totalorder %s145, 0
      %s148 = sadd.s32 %s147, 1
      %s149 = scalar_select %p146, %s147, %s148
      %p152 = pneg %p146
      %p153 = scmp.eq.s32.totalorder %s21, 1
      %p154 = por %p152, %p153
      %p155 = scmp.ne.s32.totalorder %s147, %s150
      %p156 = scmp.eq.s32.totalorder %s21, 0
      %p157 = por %p155, %p156
      %p158 = scmp.ne.s32.totalorder %s147, %s150
      %p159 = scmp.eq.s32.totalorder %s26, 1
      %p160 = por %p158, %p159
      %p161 = scmp.ne.s32.totalorder %s150, %s151
      %p162 = scmp.eq.s32.totalorder %s26, 0
      %p163 = por %p161, %p162
      %p164 = scmp.ne.s32.totalorder %s150, %s151
      %p165 = scmp.eq.s32.totalorder %s27, 1
      %p166 = por %p164, %p165
      %p168 = scmp.ne.s32.totalorder %s151, %s167
      %p169 = scmp.eq.s32.totalorder %s27, 0
      %p170 = por %p168, %p169
      %s171 = ssub.s32 %s29, %s36
      %p172 = scmp.eq.s32.totalorder %s171, 0
      %s174 = sadd.s32 %s173, 1
      %s175 = scalar_select %p172, %s173, %s174
      %p178 = pneg %p172
      %p179 = scmp.eq.s32.totalorder %s21, 1
      %p180 = por %p178, %p179
      %p181 = scmp.ne.s32.totalorder %s173, %s176
      %p182 = scmp.eq.s32.totalorder %s21, 0
      %p183 = por %p181, %p182
      %p184 = scmp.ne.s32.totalorder %s173, %s176
      %p185 = scmp.eq.s32.totalorder %s26, 1
      %p186 = por %p184, %p185
      %p187 = scmp.ne.s32.totalorder %s176, %s177
      %p188 = scmp.eq.s32.totalorder %s26, 0
      %p189 = por %p187, %p188
      %p190 = scmp.ne.s32.totalorder %s176, %s177
      %p191 = scmp.eq.s32.totalorder %s27, 1
      %p192 = por %p190, %p191
      %p194 = scmp.ne.s32.totalorder %s177, %s193
      %p195 = scmp.eq.s32.totalorder %s27, 0
      %p196 = por %p194, %p195
      %s197 = ssub.s32 %s29, %s36
      %p198 = scmp.eq.s32.totalorder %s197, 0
      %s200 = sadd.s32 %s199, 1
      %s201 = scalar_select %p198, %s199, %s200
      %p204 = pneg %p198
      %p205 = scmp.eq.s32.totalorder %s21, 1
      %p206 = por %p204, %p205
      %p207 = scmp.ne.s32.totalorder %s199, %s202
      %p208 = scmp.eq.s32.totalorder %s21, 0
      %p209 = por %p207, %p208
      %p210 = scmp.ne.s32.totalorder %s199, %s202
      %p211 = scmp.eq.s32.totalorder %s26, 1
      %p212 = por %p210, %p211
      %p213 = scmp.ne.s32.totalorder %s202, %s203
      %p214 = scmp.eq.s32.totalorder %s26, 0
      %p215 = por %p213, %p214
      %p216 = scmp.ne.s32.totalorder %s202, %s203
      %p217 = scmp.eq.s32.totalorder %s27, 1
      %p218 = por %p216, %p217
      %p220 = scmp.ne.s32.totalorder %s203, %s219
      %p221 = scmp.eq.s32.totalorder %s27, 0
      %p222 = por %p220, %p221
      %s223 = ssub.s32 %s29, %s36
      %p224 = scmp.eq.s32.totalorder %s223, 0
      %s226 = sadd.s32 %s225, 1
      %s227 = scalar_select %p224, %s225, %s226
      %p230 = pneg %p224
      %p231 = scmp.eq.s32.totalorder %s21, 1
      %p232 = por %p230, %p231
      %p233 = scmp.ne.s32.totalorder %s225, %s228
      %p234 = scmp.eq.s32.totalorder %s21, 0
      %p235 = por %p233, %p234
      %p236 = scmp.ne.s32.totalorder %s225, %s228
      %p237 = scmp.eq.s32.totalorder %s26, 1
      %p238 = por %p236, %p237
      %p239 = scmp.ne.s32.totalorder %s228, %s229
      %p240 = scmp.eq.s32.totalorder %s26, 0
      %p241 = por %p239, %p240
      %p242 = scmp.ne.s32.totalorder %s228, %s229
      %p243 = scmp.eq.s32.totalorder %s27, 1
      %p244 = por %p242, %p243
      %p246 = scmp.ne.s32.totalorder %s229, %s245
      %p247 = scmp.eq.s32.totalorder %s27, 0
      %p248 = por %p246, %p247
      %s249 = ssub.s32 %s29, %s36
      %p250 = scmp.eq.s32.totalorder %s249, 0
      %s252 = sadd.s32 %s251, 1
      %s253 = scalar_select %p250, %s251, %s252
      %p256 = pneg %p250
      %p257 = scmp.eq.s32.totalorder %s21, 1
      %p258 = por %p256, %p257
      %p259 = scmp.ne.s32.totalorder %s251, %s254
      %p260 = scmp.eq.s32.totalorder %s21, 0
      %p261 = por %p259, %p260
      %p262 = scmp.ne.s32.totalorder %s251, %s254
      %p263 = scmp.eq.s32.totalorder %s26, 1
      %p264 = por %p262, %p263
      %p265 = scmp.ne.s32.totalorder %s254, %s255
      %p266 = scmp.eq.s32.totalorder %s26, 0
      %p267 = por %p265, %p266
      %p268 = scmp.ne.s32.totalorder %s254, %s255
      %p269 = scmp.eq.s32.totalorder %s27, 1
      %p270 = por %p268, %p269
      %p272 = scmp.ne.s32.totalorder %s255, %s271
      %p273 = scmp.eq.s32.totalorder %s27, 0
      %p274 = por %p272, %p273
      %s275 = ssub.s32 %s28, %s40
      %p276 = scmp.eq.s32.totalorder %s275, 0
      %s278 = sadd.s32 %s277, 1
      %s279 = scalar_select %p276, %s277, %s278
      %p282 = pneg %p276
      %p283 = scmp.eq.s32.totalorder %s21, 1
      %p284 = por %p282, %p283
      %p285 = scmp.ne.s32.totalorder %s277, %s280
      %p286 = scmp.eq.s32.totalorder %s21, 0
      %p287 = por %p285, %p286
      %p288 = scmp.ne.s32.totalorder %s277, %s280
      %p289 = scmp.eq.s32.totalorder %s26, 1
      %p290 = por %p288, %p289
      %p291 = scmp.ne.s32.totalorder %s280, %s281
      %p292 = scmp.eq.s32.totalorder %s26, 0
      %p293 = por %p291, %p292
      %p294 = scmp.ne.s32.totalorder %s280, %s281
      %p295 = scmp.eq.s32.totalorder %s27, 1
      %p296 = por %p294, %p295
      %p298 = scmp.ne.s32.totalorder %s281, %s297
      %p299 = scmp.eq.s32.totalorder %s27, 0
      %p300 = por %p298, %p299
      %p301 = scmp.le.s32.totalorder 1, %s21
      %p302 = scmp.lt.s32.totalorder %s21, 3
      %p303 = pnand %p301, %p302
      %p304 = pneg %p303
      // Predicated region
      $region9: #{tree_encoder_forward.1} parent=5 // pred_check
        _
      $region10: #{tree_encoder_forward.1} parent=5 // pred_check_branch
        %306 = sbr.rel (%p303) target = $region12
      $region11: #{tree_encoder_forward.1} parent=5 // pred_region
        %s307 = ssub.s32 %s21, 1
        // Predicated region
        $region13: #{tree_encoder_forward.1} parent=11 // pred_check
          %p308 = pneg %p59
        $region14: #{tree_encoder_forward.1} parent=11 // pred_check_branch
          %310 = sbr.rel (%p308) target = $region16
        $region15: #{tree_encoder_forward.1} parent=11 // pred_region
          %s311 = smul.u32 2, %s30
          %p312 = scmp.lt.s32.totalorder %s311, 1
          %s313 = scalar_select %p312, %s311, 1
          %s314 = smul.addr %s313, 8
          %s315 = scalar_lea.vmem %s0, %s314
          %s316 = smul.u32 2, %s30
        $region16: #{tree_encoder_forward.1} parent=11 // pred_fallthru
          _
        // Predicated region
        $region17: #{tree_encoder_forward.1} parent=11 // pred_check
          %p317 = pneg %p85
        $region18: #{tree_encoder_forward.1} parent=11 // pred_check_branch
          %319 = sbr.rel (%p317) target = $region20
        $region19: #{tree_encoder_forward.1} parent=11 // pred_region
          %s320 = smul.u32 2, %s30
          %p321 = scmp.lt.s32.totalorder %s320, 1
          %s322 = scalar_select %p321, %s320, 1
          %s323 = scalar_lea.vmem %s1, %s322
          %s324 = smul.u32 2, %s30
        $region20: #{tree_encoder_forward.1} parent=11 // pred_fallthru
          _
      $region12: #{tree_encoder_forward.1} parent=5 // pred_fallthru
        _
      %p325 = scmp.lt.s32.totalorder %s21, 2
      // Predicated region
      $region21: #{tree_encoder_forward.1} parent=5 // pred_check
        %p326 = pneg %p325
      $region22: #{tree_encoder_forward.1} parent=5 // pred_check_branch
        %328 = sbr.rel (%p326) target = $region24
      $region23: #{tree_encoder_forward.1} parent=5 // pred_region
        // Predicated region
        $region25: #{tree_encoder_forward.1} parent=23 // pred_check
          %p329 = pneg %p105
        $region26: #{tree_encoder_forward.1} parent=23 // pred_check_branch
          %331 = sbr.rel (%p329) target = $region28
        $region27: #{tree_encoder_forward.1} parent=23 // pred_region
          %p332 = scmp.lt.s32.totalorder %s29, 1
          %s333 = scalar_select %p332, %s29, 1
          %s334 = smul.addr %s333, 16
          %s335 = smul.addr %s334, 4
          %s336 = scalar_lea.vmem %s2, %s335
        $region28: #{tree_encoder_forward.1} parent=23 // pred_fallthru
          _
        // Predicated region
        $region29: #{tree_encoder_forward.1} parent=23 // pred_check
          %p337 = pneg %p131
        $region30: #{tree_encoder_forward.1} parent=23 // pred_check_branch
          %339 = sbr.rel (%p337) target = $region32
        $region31: #{tree_encoder_forward.1} parent=23 // pred_region
          %p340 = scmp.lt.s32.totalorder %s29, 1
          %s341 = scalar_select %p340, %s29, 1
          %s342 = smul.addr %s341, 16
          %s343 = smul.addr %s342, 4
          %s344 = scalar_lea.vmem %s3, %s343
        $region32: #{tree_encoder_forward.1} parent=23 // pred_fallthru
          _
        // Predicated region
        $region33: #{tree_encoder_forward.1} parent=23 // pred_check
          %p345 = pneg %p157
        $region34: #{tree_encoder_forward.1} parent=23 // pred_check_branch
          %347 = sbr.rel (%p345) target = $region36
        $region35: #{tree_encoder_forward.1} parent=23 // pred_region
          %p348 = scmp.lt.s32.totalorder %s29, 1
          %s349 = scalar_select %p348, %s29, 1
          %s350 = smul.addr %s349, 16
          %s351 = smul.addr %s350, 4
          %s352 = scalar_lea.vmem %s4, %s351
        $region36: #{tree_encoder_forward.1} parent=23 // pred_fallthru
          _
        // Predicated region
        $region37: #{tree_encoder_forward.1} parent=23 // pred_check
          %p353 = pneg %p183
        $region38: #{tree_encoder_forward.1} parent=23 // pred_check_branch
          %355 = sbr.rel (%p353) target = $region40
        $region39: #{tree_encoder_forward.1} parent=23 // pred_region
          %s356 = sand.u32 %s173, 1
          %s357 = scalar_lea.sflag [#allocation3], %s356
          %s358 = sand.u32 %s173, 1
          %s359 = smul.addr %s358, 64
          %s360 = scalar_lea.vmem [#allocation2], %s359
          %362 = vsyncadd %s357, 0
          %s363 = smul.addr %s29, 16
          %s364 = smul.addr %s363, 4
          %s365 = scalar_lea.hbm %s5, %s364
          %s366 = sshll.u32 %s365, 4
          %s367 = int_to_ptr.hbm [resolvable:$true] %s366
          %s368 = sshll.u32 %s360, 4
          %s369 = int_to_ptr.vmem [resolvable:$true] %s368
          %374 = dma.hbm_to_vmem [thread:$0]  %s367, 1024, %s369, %s357, 64, 64, 4
        $region40: #{tree_encoder_forward.1} parent=23 // pred_fallthru
          _
        // Predicated region
        $region41: #{tree_encoder_forward.1} parent=23 // pred_check
          %p375 = pneg %p209
        $region42: #{tree_encoder_forward.1} parent=23 // pred_check_branch
          %377 = sbr.rel (%p375) target = $region44
        $region43: #{tree_encoder_forward.1} parent=23 // pred_region
          %s378 = sand.u32 %s21, 1
          %s379 = scalar_lea.sflag [#allocation5], %s378
          %s380 = sand.u32 %s199, 1
          %s381 = smul.addr %s380, 64
          %s382 = scalar_lea.vmem [#allocation4], %s381
          %384 = vsyncadd %s379, 0
          %s385 = smul.addr %s29, 16
          %s386 = smul.addr %s385, 4
          %s387 = scalar_lea.hbm %s6, %s386
          %s388 = sshll.u32 %s387, 4
          %s389 = int_to_ptr.hbm [resolvable:$true] %s388
          %s390 = sshll.u32 %s382, 4
          %s391 = int_to_ptr.vmem [resolvable:$true] %s390
          %396 = dma.hbm_to_vmem [thread:$0]  %s389, 1024, %s391, %s379, 64, 64, 4
        $region44: #{tree_encoder_forward.1} parent=23 // pred_fallthru
          _
        // Predicated region
        $region45: #{tree_encoder_forward.1} parent=23 // pred_check
          %p397 = pneg %p235
        $region46: #{tree_encoder_forward.1} parent=23 // pred_check_branch
          %399 = sbr.rel (%p397) target = $region48
        $region47: #{tree_encoder_forward.1} parent=23 // pred_region
          %s400 = sand.u32 %s21, 1
          %s401 = scalar_lea.sflag [#allocation5], %s400
          %s402 = sand.u32 %s225, 1
          %s403 = smul.addr %s402, 64
          %s404 = scalar_lea.vmem [#allocation6], %s403
          %406 = vsyncadd %s401, 0
          %s407 = smul.addr %s29, 16
          %s408 = smul.addr %s407, 4
          %s409 = scalar_lea.hbm %s7, %s408
          %s410 = sshll.u32 %s409, 4
          %s411 = int_to_ptr.hbm [resolvable:$true] %s410
          %s412 = sshll.u32 %s404, 4
          %s413 = int_to_ptr.vmem [resolvable:$true] %s412
          %418 = dma.hbm_to_vmem [thread:$0]  %s411, 1024, %s413, %s401, 64, 64, 4
        $region48: #{tree_encoder_forward.1} parent=23 // pred_fallthru
          _
        // Predicated region
        $region49: #{tree_encoder_forward.1} parent=23 // pred_check
          %p419 = pneg %p261
        $region50: #{tree_encoder_forward.1} parent=23 // pred_check_branch
          %421 = sbr.rel (%p419) target = $region52
        $region51: #{tree_encoder_forward.1} parent=23 // pred_region
          %p422 = scmp.lt.s32.totalorder %s29, 1
          %s423 = scalar_select %p422, %s29, 1
          %s424 = smul.addr %s423, 2
          %s425 = smul.addr %s424, 8
          %s426 = scalar_lea.vmem %s8, %s425
        $region52: #{tree_encoder_forward.1} parent=23 // pred_fallthru
          _
      $region24: #{tree_encoder_forward.1} parent=5 // pred_fallthru
        _
      %p427 = scmp.le.s32.totalorder 1, %s21
      %p428 = scmp.lt.s32.totalorder %s21, 3
      %p429 = pnand %p427, %p428
      %p430 = pneg %p429
      // Predicated region
      $region53: #{tree_encoder_forward.1} parent=5 // pred_check
        _
      $region54: #{tree_encoder_forward.1} parent=5 // pred_check_branch
        %432 = sbr.rel (%p429) target = $region56
      $region55: #{tree_encoder_forward.1} parent=5 // pred_region
        %s433 = ssub.s32 %s21, 1
        %s434 = sand.u32 %s176, 1
        %s435 = scalar_lea.sflag [#allocation3], %s434
        %s436 = sand.u32 %s176, 1
        %s437 = smul.addr %s436, 64
        %s438 = scalar_lea.vmem [#allocation2], %s437
        // Predicated region
        $region57: #{tree_encoder_forward.1} parent=55 // pred_check
          %p439 = pneg %p189
        $region58: #{tree_encoder_forward.1} parent=55 // pred_check_branch
          %441 = sbr.rel (%p439) target = $region60
        $region59: #{tree_encoder_forward.1} parent=55 // pred_region
          %443 = dma.done %s435, 1024
        $region60: #{tree_encoder_forward.1} parent=55 // pred_fallthru
          _
        %s444 = sand.u32 %s26, 1
        %s445 = scalar_lea.sflag [#allocation5], %s444
        %s446 = sand.u32 %s202, 1
        %s447 = smul.addr %s446, 64
        %s448 = scalar_lea.vmem [#allocation4], %s447
        // Predicated region
        $region61: #{tree_encoder_forward.1} parent=55 // pred_check
          %p449 = pneg %p215
        $region62: #{tree_encoder_forward.1} parent=55 // pred_check_branch
          %451 = sbr.rel (%p449) target = $region64
        $region63: #{tree_encoder_forward.1} parent=55 // pred_region
          %453 = dma.done %s445, 1024
        $region64: #{tree_encoder_forward.1} parent=55 // pred_fallthru
          _
        %s454 = sand.u32 %s26, 1
        %s455 = scalar_lea.sflag [#allocation5], %s454
        %s456 = sand.u32 %s228, 1
        %s457 = smul.addr %s456, 64
        %s458 = scalar_lea.vmem [#allocation6], %s457
        // Predicated region
        $region65: #{tree_encoder_forward.1} parent=55 // pred_check
          %p459 = pneg %p241
        $region66: #{tree_encoder_forward.1} parent=55 // pred_check_branch
          %461 = sbr.rel (%p459) target = $region68
        $region67: #{tree_encoder_forward.1} parent=55 // pred_region
          %463 = dma.done %s455, 1024
        $region68: #{tree_encoder_forward.1} parent=55 // pred_fallthru
          _
        %s464 = smul.u32 2, %s30
        %p465 = scmp.lt.s32.totalorder %s464, 1
        %s466 = scalar_select %p465, %s464, 1
        %s467 = smul.addr %s466, 8
        %s468 = scalar_lea.vmem %s0, %s467
        %p469 = pneg %p59
        %p470 = pneg %p56
        %s471 = smul.u32 2, %s30
        %p472 = scmp.lt.s32.totalorder %s471, 1
        %s473 = scalar_select %p472, %s471, 1
        %s474 = scalar_lea.vmem %s1, %s473
        %p475 = pneg %p85
        %p476 = pneg %p82
        %p477 = scmp.lt.s32.totalorder %s31, 1
        %s478 = scalar_select %p477, %s31, 1
        %s479 = smul.addr %s478, 16
        %s480 = smul.addr %s479, 4
        %s481 = scalar_lea.vmem %s2, %s480
        %p482 = pneg %p111
        %p483 = pneg %p108
        %p484 = scmp.lt.s32.totalorder %s31, 1
        %s485 = scalar_select %p484, %s31, 1
        %s486 = smul.addr %s485, 16
        %s487 = smul.addr %s486, 4
        %s488 = scalar_lea.vmem %s3, %s487
        %p489 = pneg %p137
        %p490 = pneg %p134
        %p491 = scmp.lt.s32.totalorder %s31, 1
        %s492 = scalar_select %p491, %s31, 1
        %s493 = smul.addr %s492, 16
        %s494 = smul.addr %s493, 4
        %s495 = scalar_lea.vmem %s4, %s494
        %p496 = pneg %p163
        %p497 = pneg %p160
        %s498 = sand.u32 %s176, 1
        %s499 = scalar_lea.sflag [#allocation3], %s498
        %s500 = sand.u32 %s176, 1
        %s501 = smul.addr %s500, 64
        %s502 = scalar_lea.vmem [#allocation2], %s501
        %p503 = pneg %p189
        %p504 = pneg %p186
        %s505 = sand.u32 %s26, 1
        %s506 = scalar_lea.sflag [#allocation5], %s505
        %s507 = sand.u32 %s202, 1
        %s508 = smul.addr %s507, 64
        %s509 = scalar_lea.vmem [#allocation4], %s508
        %p510 = pneg %p215
        %p511 = pneg %p212
        %s512 = sand.u32 %s26, 1
        %s513 = scalar_lea.sflag [#allocation5], %s512
        %s514 = sand.u32 %s228, 1
        %s515 = smul.addr %s514, 64
        %s516 = scalar_lea.vmem [#allocation6], %s515
        %p517 = pneg %p241
        %p518 = pneg %p238
        %p519 = scmp.lt.s32.totalorder %s31, 1
        %s520 = scalar_select %p519, %s31, 1
        %s521 = smul.addr %s520, 2
        %s522 = smul.addr %s521, 8
        %s523 = scalar_lea.vmem %s8, %s522
        %p524 = pneg %p267
        %p525 = pneg %p264
        %p526 = pneg %p293
        %p527 = pneg %p290
        %s528 = smul.u32 2, %s30
        %p529 = scmp.lt.s32.totalorder %s528, 1
        %s530 = scalar_select %p529, %s528, 1
        %s531 = smul.addr %s530, 8
        %s532 = scalar_lea.vmem %s9, %s531
        %s533 = smul.u32 2, %s30
        %p534 = scmp.lt.s32.totalorder %s533, 1
        %s535 = scalar_select %p534, %s533, 1
        %s536 = smul.addr %s535, 8
        %s537 = scalar_lea.vmem %s0, %s536
        %s538 = smul.u32 2, %s30
        %s539 = smul.u32 2, %s30
        %p540 = scmp.lt.s32.totalorder %s539, 1
        %s541 = scalar_select %p540, %s539, 1
        %s542 = scalar_lea.vmem %s1, %s541
        %s543 = smul.u32 2, %s30
        %p544 = scmp.lt.s32.totalorder %s31, 1
        %s545 = scalar_select %p544, %s31, 1
        %s546 = smul.addr %s545, 16
        %s547 = smul.addr %s546, 4
        %s548 = scalar_lea.vmem %s2, %s547
        %p549 = scmp.lt.s32.totalorder %s31, 1
        %s550 = scalar_select %p549, %s31, 1
        %s551 = smul.addr %s550, 16
        %s552 = smul.addr %s551, 4
        %s553 = scalar_lea.vmem %s3, %s552
        %p554 = scmp.lt.s32.totalorder %s31, 1
        %s555 = scalar_select %p554, %s31, 1
        %s556 = smul.addr %s555, 16
        %s557 = smul.addr %s556, 4
        %s558 = scalar_lea.vmem %s4, %s557
        %p559 = scmp.lt.s32.totalorder %s31, 1
        %s560 = scalar_select %p559, %s31, 1
        %s561 = smul.addr %s560, 2
        %s562 = smul.addr %s561, 8
        %s563 = scalar_lea.vmem %s8, %s562
        %s564 = smul.u32 2, %s30
        %p565 = scmp.lt.s32.totalorder %s564, 1
        %s566 = scalar_select %p565, %s564, 1
        %s567 = smul.addr %s566, 8
        %s568 = scalar_lea.vmem %s9, %s567
        %s569 = smul.u32 2, %s30
        %p571 = scmp.eq.s32.totalorder %s31, 0
        // Predicated region
        $region69: #{tree_encoder_forward.1} parent=55 // pred_check
          %p572 = pneg %p571
        $region70: #{tree_encoder_forward.1} parent=55 // pred_check_branch
          %574 = sbr.rel (%p572) target = $region72
        $region71: #{tree_encoder_forward.1} parent=55 // pred_region
          %v575 = vld [vmem:[%s537] sm:$0xff]
          %v576 = vld [vmem:[%s537 + $0x8] sm:$0xff]
          %577 = vst [vmem:[%s568] sm:$0xff] %v575
          %578 = vst [vmem:[%s568 + $0x8] sm:$0xff] %v576
        $region72: #{tree_encoder_forward.1} parent=55 // pred_fallthru
          _
        %v579 = vld [vmem:[%s568] sm:$0xff]
        %v580 = vld [vmem:[%s568 + $0x8] sm:$0xff]
        %v581 = vpack.c.bf16 %v580, %v579
        %v582 = vld [vmem:[%s563] sm:$0xff]
        %v583 = vld [vmem:[%s563 + $0x8] sm:$0xff]
        %v584 = vld [vmem:[%s542] sm:$0x1]
        %v585 = vld [vmem:[%s542 + $0x1] sm:$0x1]
        %v586 = vsub.f32 %v584, 1.0
        %v587 = vsub.f32 %v585, 1.0
        %v588 = vmul.f32 %v586, 1e+09
        %v589 = vmul.f32 %v587, 1e+09
        %v590 = vld [vmem:[%s548] sm:$0xf]
        %v591 = vld [vmem:[%s548 + $0x4] sm:$0xf]
        %v592 = vld [vmem:[%s548 + $0x8] sm:$0xf]
        %v593 = vld [vmem:[%s548 + $0xc] sm:$0xf]
        %v594 = vld [vmem:[%s548 + $0x10] sm:$0xf]
        %v595 = vld [vmem:[%s548 + $0x14] sm:$0xf]
        %v596 = vld [vmem:[%s548 + $0x18] sm:$0xf]
        %v597 = vld [vmem:[%s548 + $0x1c] sm:$0xf]
        %v598 = vld [vmem:[%s548 + $0x20] sm:$0xf]
        %v599 = vld [vmem:[%s548 + $0x24] sm:$0xf]
        %v600 = vld [vmem:[%s548 + $0x28] sm:$0xf]
        %v601 = vld [vmem:[%s548 + $0x2c] sm:$0xf]
        %v602 = vld [vmem:[%s548 + $0x30] sm:$0xf]
        %v603 = vld [vmem:[%s548 + $0x34] sm:$0xf]
        %v604 = vld [vmem:[%s548 + $0x38] sm:$0xf]
        %v605 = vld [vmem:[%s548 + $0x3c] sm:$0xf]
        %v606 = vperm.slane %v582, 0
        %v623 = vunpack.c.l.b16 %v590
        %v624 = vunpack.c.l.b16 %v591
        %v625 = vunpack.c.l.b16 %v592
        %v626 = vunpack.c.l.b16 %v593
        %v627 = vunpack.c.l.b16 %v594
        %v628 = vunpack.c.l.b16 %v595
        %v629 = vunpack.c.l.b16 %v596
        %v630 = vunpack.c.l.b16 %v597
        %v631 = vunpack.c.l.b16 %v598
        %v632 = vunpack.c.l.b16 %v599
        %v633 = vunpack.c.l.b16 %v600
        %v634 = vunpack.c.l.b16 %v601
        %v635 = vunpack.c.l.b16 %v602
        %v636 = vunpack.c.l.b16 %v603
        %v637 = vunpack.c.l.b16 %v604
        %v638 = vunpack.c.l.b16 %v605
        %v639 = vpack.c.b16 %v624, %v623
        %v640 = vpack.c.b16 %v626, %v625
        %v641 = vpack.c.b16 %v628, %v627
        %v642 = vpack.c.b16 %v630, %v629
        %v643 = vpack.c.b16 %v632, %v631
        %v644 = vpack.c.b16 %v634, %v633
        %v645 = vpack.c.b16 %v636, %v635
        %v646 = vpack.c.b16 %v638, %v637
        %655 = vmatpush.bf16.msra.mxu0 %v646
        %656 = vmatpush.bf16.msra.mxu0 %v645
        %657 = vmatpush.bf16.msra.mxu0 %v644
        %658 = vmatpush.bf16.msra.mxu0 %v643
        %659 = vmatpush.bf16.msra.mxu0 %v642
        %660 = vmatpush.bf16.msra.mxu0 %v641
        %661 = vmatpush.bf16.msra.mxu0 %v640
        %662 = vmatpush.bf16.msra.mxu0 %v639
        %663 = vmatmul.bf16.gmra.mxu0 %v581
        %v664 = vpop.f32.mrf.mxu0
        %v665 = vadd.f32 %v606, %v664
        %v666 = vpop.f32.mrf.mxu0
        %v667 = vadd.f32 %v606, %v666
        %668 = vdwg.mxu0
        %v669 = vld [vmem:[%s553] sm:$0xf]
        %v670 = vld [vmem:[%s553 + $0x4] sm:$0xf]
        %v671 = vld [vmem:[%s553 + $0x8] sm:$0xf]
        %v672 = vld [vmem:[%s553 + $0xc] sm:$0xf]
        %v673 = vld [vmem:[%s553 + $0x10] sm:$0xf]
        %v674 = vld [vmem:[%s553 + $0x14] sm:$0xf]
        %v675 = vld [vmem:[%s553 + $0x18] sm:$0xf]
        %v676 = vld [vmem:[%s553 + $0x1c] sm:$0xf]
        %v677 = vld [vmem:[%s553 + $0x20] sm:$0xf]
        %v678 = vld [vmem:[%s553 + $0x24] sm:$0xf]
        %v679 = vld [vmem:[%s553 + $0x28] sm:$0xf]
        %v680 = vld [vmem:[%s553 + $0x2c] sm:$0xf]
        %v681 = vld [vmem:[%s553 + $0x30] sm:$0xf]
        %v682 = vld [vmem:[%s553 + $0x34] sm:$0xf]
        %v683 = vld [vmem:[%s553 + $0x38] sm:$0xf]
        %v684 = vld [vmem:[%s553 + $0x3c] sm:$0xf]
        %v685 = vperm.slane %v582, 1
        %v702 = vunpack.c.l.b16 %v669
        %v703 = vunpack.c.l.b16 %v670
        %v704 = vunpack.c.l.b16 %v671
        %v705 = vunpack.c.l.b16 %v672
        %v706 = vunpack.c.l.b16 %v673
        %v707 = vunpack.c.l.b16 %v674
        %v708 = vunpack.c.l.b16 %v675
        %v709 = vunpack.c.l.b16 %v676
        %v710 = vunpack.c.l.b16 %v677
        %v711 = vunpack.c.l.b16 %v678
        %v712 = vunpack.c.l.b16 %v679
        %v713 = vunpack.c.l.b16 %v680
        %v714 = vunpack.c.l.b16 %v681
        %v715 = vunpack.c.l.b16 %v682
        %v716 = vunpack.c.l.b16 %v683
        %v717 = vunpack.c.l.b16 %v684
        %v718 = vpack.c.b16 %v703, %v702
        %v719 = vpack.c.b16 %v705, %v704
        %v720 = vpack.c.b16 %v707, %v706
        %v721 = vpack.c.b16 %v709, %v708
        %v722 = vpack.c.b16 %v711, %v710
        %v723 = vpack.c.b16 %v713, %v712
        %v724 = vpack.c.b16 %v715, %v714
        %v725 = vpack.c.b16 %v717, %v716
        %734 = vmatpush.bf16.msra.mxu0 %v725
        %735 = vmatpush.bf16.msra.mxu0 %v724
        %736 = vmatpush.bf16.msra.mxu0 %v723
        %737 = vmatpush.bf16.msra.mxu0 %v722
        %738 = vmatpush.bf16.msra.mxu0 %v721
        %739 = vmatpush.bf16.msra.mxu0 %v720
        %740 = vmatpush.bf16.msra.mxu0 %v719
        %741 = vmatpush.bf16.msra.mxu0 %v718
        %742 = vmatmul.bf16.gmra.mxu0 %v581
        %v743 = vpop.f32.mrf.mxu0
        %v744 = vadd.f32 %v685, %v743
        %v745 = vpop.f32.mrf.mxu0
        %v746 = vadd.f32 %v685, %v745
        %747 = vdwg.mxu0
        %v748 = vld [vmem:[%s558] sm:$0xf]
        %v749 = vld [vmem:[%s558 + $0x4] sm:$0xf]
        %v750 = vld [vmem:[%s558 + $0x8] sm:$0xf]
        %v751 = vld [vmem:[%s558 + $0xc] sm:$0xf]
        %v752 = vld [vmem:[%s558 + $0x10] sm:$0xf]
        %v753 = vld [vmem:[%s558 + $0x14] sm:$0xf]
        %v754 = vld [vmem:[%s558 + $0x18] sm:$0xf]
        %v755 = vld [vmem:[%s558 + $0x1c] sm:$0xf]
        %v756 = vld [vmem:[%s558 + $0x20] sm:$0xf]
        %v757 = vld [vmem:[%s558 + $0x24] sm:$0xf]
        %v758 = vld [vmem:[%s558 + $0x28] sm:$0xf]
        %v759 = vld [vmem:[%s558 + $0x2c] sm:$0xf]
        %v760 = vld [vmem:[%s558 + $0x30] sm:$0xf]
        %v761 = vld [vmem:[%s558 + $0x34] sm:$0xf]
        %v762 = vld [vmem:[%s558 + $0x38] sm:$0xf]
        %v763 = vld [vmem:[%s558 + $0x3c] sm:$0xf]
        %v764 = vperm.slane %v582, 2
        %v781 = vunpack.c.l.b16 %v748
        %v782 = vunpack.c.l.b16 %v749
        %v783 = vunpack.c.l.b16 %v750
        %v784 = vunpack.c.l.b16 %v751
        %v785 = vunpack.c.l.b16 %v752
        %v786 = vunpack.c.l.b16 %v753
        %v787 = vunpack.c.l.b16 %v754
        %v788 = vunpack.c.l.b16 %v755
        %v789 = vunpack.c.l.b16 %v756
        %v790 = vunpack.c.l.b16 %v757
        %v791 = vunpack.c.l.b16 %v758
        %v792 = vunpack.c.l.b16 %v759
        %v793 = vunpack.c.l.b16 %v760
        %v794 = vunpack.c.l.b16 %v761
        %v795 = vunpack.c.l.b16 %v762
        %v796 = vunpack.c.l.b16 %v763
        %v797 = vpack.c.b16 %v782, %v781
        %v798 = vpack.c.b16 %v784, %v783
        %v799 = vpack.c.b16 %v786, %v785
        %v800 = vpack.c.b16 %v788, %v787
        %v801 = vpack.c.b16 %v790, %v789
        %v802 = vpack.c.b16 %v792, %v791
        %v803 = vpack.c.b16 %v794, %v793
        %v804 = vpack.c.b16 %v796, %v795
        %813 = vmatpush.bf16.msra.mxu0 %v804
        %814 = vmatpush.bf16.msra.mxu0 %v803
        %815 = vmatpush.bf16.msra.mxu0 %v802
        %816 = vmatpush.bf16.msra.mxu0 %v801
        %817 = vmatpush.bf16.msra.mxu0 %v800
        %818 = vmatpush.bf16.msra.mxu0 %v799
        %819 = vmatpush.bf16.msra.mxu0 %v798
        %820 = vmatpush.bf16.msra.mxu0 %v797
        %821 = vmatmul.bf16.gmra.mxu0 %v581
        %v822 = vpop.f32.mrf.mxu0
        %v823 = vadd.f32 %v764, %v822
        %v824 = vpop.f32.mrf.mxu0
        %v825 = vadd.f32 %v764, %v824
        %826 = vdwg.mxu0
        %v827 = vpack.c.bf16 %v665, %v665
        %v828 = vpack.c.bf16 %v667, %v667
        %v829 = vpack.c.bf16 %v744, %v744
        %v830 = vpack.c.bf16 %v746, %v746
        %v831 = vpack.c.bf16 %v823, %v823
        %v832 = vpack.c.bf16 %v825, %v825
        %vm833 = vcmask 130048
        %v835 = vsel %vm833, %v827, 0
        %v838 = vsel %vm833, %v829, 0
        %840 = vmatpush.bf16.xpose.msra.mxu0 0
        %841 = vmatpush.bf16.xpose.msra.mxu0 0
        %842 = vmatpush.bf16.xpose.msra.mxu0 0
        %843 = vmatpush.bf16.xpose.msra.mxu0 0
        %844 = vmatpush.bf16.xpose.msra.mxu0 0
        %845 = vmatpush.bf16.xpose.msra.mxu0 0
        %846 = vmatpush.bf16.xpose.msra.mxu0 0
        %847 = vmatpush.bf16.xpose.msra.mxu0 %v838
        %848 = vmatmul.bf16.gmra.mxu0 %v835
        %v849 = vpop.f32.mrf.mxu0
        %v850 = vadd.f32 0.0, %v849
        %v851 = vpop.f32.mrf.mxu0
        %852 = vdwg.mxu0
        %v854 = vsel %vm833, %v828, 0
        %v857 = vsel %vm833, %v830, 0
        %859 = vmatpush.bf16.xpose.msra.mxu0 0
        %860 = vmatpush.bf16.xpose.msra.mxu0 0
        %861 = vmatpush.bf16.xpose.msra.mxu0 0
        %862 = vmatpush.bf16.xpose.msra.mxu0 0
        %863 = vmatpush.bf16.xpose.msra.mxu0 0
        %864 = vmatpush.bf16.xpose.msra.mxu0 0
        %865 = vmatpush.bf16.xpose.msra.mxu0 0
        %866 = vmatpush.bf16.xpose.msra.mxu0 %v857
        %867 = vmatmul.bf16.gmra.mxu0 %v854
        %v868 = vpop.f32.mrf.mxu0
        %v869 = vadd.f32 0.0, %v868
        %v870 = vpop.f32.mrf.mxu0
        %871 = vdwg.mxu0
        %v872 = vmul.f32 %v850, 0.25
        %v873 = vmul.f32 %v869, 0.25
        %v876 = vperm.slane %v584, 0
        %v877 = vperm.slane %v585, 0
        %v880 = vmul.f32 %v872, %v876
        %v881 = vmul.f32 %v873, %v877
        %v884 = vperm.slane %v588, 0
        %v885 = vperm.slane %v589, 0
        %v888 = vadd.f32 %v880, %v884
        %v889 = vadd.f32 %v881, %v885
        %vm890 = vcmask 64512
        %v891 = vsel %vm890, %v888, -inf
        %892 = vmax.xlane.f32.xlu0 %v891
        %v893 = vpop.xlane.xlu0 %892
        %v894 = vsel %vm890, %v889, -inf
        %895 = vmax.xlane.f32.xlu0 %v894
        %v896 = vpop.xlane.xlu0 %895
        %v897 = vsub.f32 %v888, %v893
        %v898 = vsub.f32 %v889, %v896
        %v899 = vmul.f32 %v897, 1.442695
        %v900 = vpow.pop %v899
        %v901 = vmul.f32 %v898, 1.442695
        %v902 = vpow.pop %v901
        %v903 = vsel %vm890, %v900, 0.0
        %904 = vadd.xlane.f32.xlu0 %v903
        %v905 = vpop.xlane.xlu0 %904
        %v906 = vsel %vm890, %v902, 0.0
        %907 = vadd.xlane.f32.xlu0 %v906
        %v908 = vpop.xlane.xlu0 %907
        %v909 = vrcp.pop %v905
        %v910 = vrcp.pop %v908
        %v911 = vmul.f32 %v900, %v909
        %v912 = vmul.f32 %v902, %v910
        %v913 = vpack.c.bf16 %v911, %v911
        %v914 = vpack.c.bf16 %v912, %v912
        %v916 = vsel %vm890, %v913, 0
        %vm918 = vcmask 1043456
        %v920 = vsel %vm918, %v831, 0
        %922 = vmatpush.bf16.msra.mxu0 0
        %923 = vmatpush.bf16.msra.mxu0 0
        %924 = vmatpush.bf16.msra.mxu0 0
        %925 = vmatpush.bf16.msra.mxu0 0
        %926 = vmatpush.bf16.msra.mxu0 0
        %927 = vmatpush.bf16.msra.mxu0 0
        %928 = vmatpush.bf16.msra.mxu0 0
        %929 = vmatpush.bf16.msra.mxu0 %v920
        %930 = vmatmul.bf16.gmra.mxu0 %v916
        %v931 = vpop.f32.mrf.mxu0
        %v932 = vadd.f32 0.0, %v931
        %v933 = vpop.f32.mrf.mxu0
        %934 = vdwg.mxu0
        %v936 = vsel %vm890, %v914, 0
        %v939 = vsel %vm918, %v832, 0
        %941 = vmatpush.bf16.msra.mxu0 0
        %942 = vmatpush.bf16.msra.mxu0 0
        %943 = vmatpush.bf16.msra.mxu0 0
        %944 = vmatpush.bf16.msra.mxu0 0
        %945 = vmatpush.bf16.msra.mxu0 0
        %946 = vmatpush.bf16.msra.mxu0 0
        %947 = vmatpush.bf16.msra.mxu0 0
        %948 = vmatpush.bf16.msra.mxu0 %v939
        %949 = vmatmul.bf16.gmra.mxu0 %v936
        %v950 = vpop.f32.mrf.mxu0
        %v951 = vadd.f32 0.0, %v950
        %v952 = vpop.f32.mrf.mxu0
        %953 = vdwg.mxu0
        %v955 = vunpack.c.l.b16 %v827
        %v956 = vpack.c.b16 %v955, %v955
        %957 = vrot.lane.b32.xlu0 %v956, 112
        %v958 = vpop.permute.xlu0 %957
        %v960 = vunpack.c.l.b16 %v829
        %v961 = vpack.c.b16 %v960, %v960
        %962 = vrot.lane.b32.xlu0 %v961, 112
        %v963 = vpop.permute.xlu0 %962
        %v965 = vsel %vm833, %v958, 0
        %v968 = vsel %vm833, %v963, 0
        %970 = vmatpush.bf16.xpose.msra.mxu0 0
        %971 = vmatpush.bf16.xpose.msra.mxu0 0
        %972 = vmatpush.bf16.xpose.msra.mxu0 0
        %973 = vmatpush.bf16.xpose.msra.mxu0 0
        %974 = vmatpush.bf16.xpose.msra.mxu0 0
        %975 = vmatpush.bf16.xpose.msra.mxu0 0
        %976 = vmatpush.bf16.xpose.msra.mxu0 0
        %977 = vmatpush.bf16.xpose.msra.mxu0 %v968
        %978 = vmatmul.bf16.gmra.mxu0 %v965
        %v979 = vpop.f32.mrf.mxu0
        %v980 = vadd.f32 0.0, %v979
        %v981 = vpop.f32.mrf.mxu0
        %982 = vdwg.mxu0
        %v984 = vunpack.c.l.b16 %v828
        %v985 = vpack.c.b16 %v984, %v984
        %986 = vrot.lane.b32.xlu0 %v985, 112
        %v987 = vpop.permute.xlu0 %986
        %v989 = vunpack.c.l.b16 %v830
        %v990 = vpack.c.b16 %v989, %v989
        %991 = vrot.lane.b32.xlu0 %v990, 112
        %v992 = vpop.permute.xlu0 %991
        %v994 = vsel %vm833, %v987, 0
        %v997 = vsel %vm833, %v992, 0
        %999 = vmatpush.bf16.xpose.msra.mxu0 0
        %1000 = vmatpush.bf16.xpose.msra.mxu0 0
        %1001 = vmatpush.bf16.xpose.msra.mxu0 0
        %1002 = vmatpush.bf16.xpose.msra.mxu0 0
        %1003 = vmatpush.bf16.xpose.msra.mxu0 0
        %1004 = vmatpush.bf16.xpose.msra.mxu0 0
        %1005 = vmatpush.bf16.xpose.msra.mxu0 0
        %1006 = vmatpush.bf16.xpose.msra.mxu0 %v997
        %1007 = vmatmul.bf16.gmra.mxu0 %v994
        %v1008 = vpop.f32.mrf.mxu0
        %v1009 = vadd.f32 0.0, %v1008
        %v1010 = vpop.f32.mrf.mxu0
        %1011 = vdwg.mxu0
        %v1012 = vmul.f32 %v980, 0.25
        %v1013 = vmul.f32 %v1009, 0.25
        %v1014 = vmul.f32 %v1012, %v876
        %v1015 = vmul.f32 %v1013, %v877
        %v1016 = vadd.f32 %v1014, %v884
        %v1017 = vadd.f32 %v1015, %v885
        %v1018 = vsel %vm890, %v1016, -inf
        %1019 = vmax.xlane.f32.xlu0 %v1018
        %v1020 = vpop.xlane.xlu0 %1019
        %v1021 = vsel %vm890, %v1017, -inf
        %1022 = vmax.xlane.f32.xlu0 %v1021
        %v1023 = vpop.xlane.xlu0 %1022
        %v1024 = vsub.f32 %v1016, %v1020
        %v1025 = vsub.f32 %v1017, %v1023
        %v1026 = vmul.f32 %v1024, 1.442695
        %v1027 = vpow.pop %v1026
        %v1028 = vmul.f32 %v1025, 1.442695
        %v1029 = vpow.pop %v1028
        %v1030 = vsel %vm890, %v1027, 0.0
        %1031 = vadd.xlane.f32.xlu0 %v1030
        %v1032 = vpop.xlane.xlu0 %1031
        %v1033 = vsel %vm890, %v1029, 0.0
        %1034 = vadd.xlane.f32.xlu0 %v1033
        %v1035 = vpop.xlane.xlu0 %1034
        %v1036 = vrcp.pop %v1032
        %v1037 = vrcp.pop %v1035
        %v1038 = vmul.f32 %v1027, %v1036
        %v1039 = vmul.f32 %v1029, %v1037
        %v1040 = vpack.c.bf16 %v1038, %v1038
        %v1041 = vpack.c.bf16 %v1039, %v1039
        %v1043 = vunpack.c.l.b16 %v831
        %v1044 = vpack.c.b16 %v1043, %v1043
        %1045 = vrot.lane.b32.xlu0 %v1044, 112
        %v1046 = vpop.permute.xlu0 %1045
        %v1048 = vsel %vm890, %v1040, 0
        %v1051 = vsel %vm918, %v1046, 0
        %1053 = vmatpush.bf16.msra.mxu0 0
        %1054 = vmatpush.bf16.msra.mxu0 0
        %1055 = vmatpush.bf16.msra.mxu0 0
        %1056 = vmatpush.bf16.msra.mxu0 0
        %1057 = vmatpush.bf16.msra.mxu0 0
        %1058 = vmatpush.bf16.msra.mxu0 0
        %1059 = vmatpush.bf16.msra.mxu0 0
        %1060 = vmatpush.bf16.msra.mxu0 %v1051
        %1061 = vmatmul.bf16.gmra.mxu0 %v1048
        %v1062 = vpop.f32.mrf.mxu0
        %v1063 = vadd.f32 0.0, %v1062
        %v1064 = vpop.f32.mrf.mxu0
        %1065 = vdwg.mxu0
        %v1067 = vunpack.c.l.b16 %v832
        %v1068 = vpack.c.b16 %v1067, %v1067
        %1069 = vrot.lane.b32.xlu0 %v1068, 112
        %v1070 = vpop.permute.xlu0 %1069
        %v1072 = vsel %vm890, %v1041, 0
        %v1075 = vsel %vm918, %v1070, 0
        %1077 = vmatpush.bf16.msra.mxu0 0
        %1078 = vmatpush.bf16.msra.mxu0 0
        %1079 = vmatpush.bf16.msra.mxu0 0
        %1080 = vmatpush.bf16.msra.mxu0 0
        %1081 = vmatpush.bf16.msra.mxu0 0
        %1082 = vmatpush.bf16.msra.mxu0 0
        %1083 = vmatpush.bf16.msra.mxu0 0
        %1084 = vmatpush.bf16.msra.mxu0 %v1075
        %1085 = vmatmul.bf16.gmra.mxu0 %v1072
        %v1086 = vpop.f32.mrf.mxu0
        %v1087 = vadd.f32 0.0, %v1086
        %v1088 = vpop.f32.mrf.mxu0
        %1089 = vdwg.mxu0
        %1092 = vrot.lane.b32.xlu0 %v1063, 16
        %v1093 = vpop.permute.xlu0 %1092
        %1094 = vrot.lane.b32.xlu0 %v1087, 16
        %v1095 = vpop.permute.xlu0 %1094
        %v1098 = vsel %vm833, %v932, %v1093
        %v1099 = vsel %vm833, %v951, %v1095
        %vm1100 = vcmask 261120
        %v1101 = vsel %vm1100, %v1098, 0.0
        %v1102 = vsel %vm1100, %v1099, 0.0
        %v1103 = vpack.c.bf16 %v1102, %v1101
        %v1104 = vld [vmem:[%s438] sm:$0xf]
        %v1105 = vld [vmem:[%s438 + $0x4] sm:$0xf]
        %v1106 = vld [vmem:[%s438 + $0x8] sm:$0xf]
        %v1107 = vld [vmem:[%s438 + $0xc] sm:$0xf]
        %v1108 = vld [vmem:[%s438 + $0x10] sm:$0xf]
        %v1109 = vld [vmem:[%s438 + $0x14] sm:$0xf]
        %v1110 = vld [vmem:[%s438 + $0x18] sm:$0xf]
        %v1111 = vld [vmem:[%s438 + $0x1c] sm:$0xf]
        %v1112 = vld [vmem:[%s438 + $0x20] sm:$0xf]
        %v1113 = vld [vmem:[%s438 + $0x24] sm:$0xf]
        %v1114 = vld [vmem:[%s438 + $0x28] sm:$0xf]
        %v1115 = vld [vmem:[%s438 + $0x2c] sm:$0xf]
        %v1116 = vld [vmem:[%s438 + $0x30] sm:$0xf]
        %v1117 = vld [vmem:[%s438 + $0x34] sm:$0xf]
        %v1118 = vld [vmem:[%s438 + $0x38] sm:$0xf]
        %v1119 = vld [vmem:[%s438 + $0x3c] sm:$0xf]
        %v1120 = vperm.slane %v582, 3
        %v1137 = vunpack.c.l.b16 %v1104
        %v1138 = vunpack.c.l.b16 %v1105
        %v1139 = vunpack.c.l.b16 %v1106
        %v1140 = vunpack.c.l.b16 %v1107
        %v1141 = vunpack.c.l.b16 %v1108
        %v1142 = vunpack.c.l.b16 %v1109
        %v1143 = vunpack.c.l.b16 %v1110
        %v1144 = vunpack.c.l.b16 %v1111
        %v1145 = vunpack.c.l.b16 %v1112
        %v1146 = vunpack.c.l.b16 %v1113
        %v1147 = vunpack.c.l.b16 %v1114
        %v1148 = vunpack.c.l.b16 %v1115
        %v1149 = vunpack.c.l.b16 %v1116
        %v1150 = vunpack.c.l.b16 %v1117
        %v1151 = vunpack.c.l.b16 %v1118
        %v1152 = vunpack.c.l.b16 %v1119
        %v1153 = vpack.c.b16 %v1138, %v1137
        %v1154 = vpack.c.b16 %v1140, %v1139
        %v1155 = vpack.c.b16 %v1142, %v1141
        %v1156 = vpack.c.b16 %v1144, %v1143
        %v1157 = vpack.c.b16 %v1146, %v1145
        %v1158 = vpack.c.b16 %v1148, %v1147
        %v1159 = vpack.c.b16 %v1150, %v1149
        %v1160 = vpack.c.b16 %v1152, %v1151
        %1169 = vmatpush.bf16.msra.mxu0 %v1160
        %1170 = vmatpush.bf16.msra.mxu0 %v1159
        %1171 = vmatpush.bf16.msra.mxu0 %v1158
        %1172 = vmatpush.bf16.msra.mxu0 %v1157
        %1173 = vmatpush.bf16.msra.mxu0 %v1156
        %1174 = vmatpush.bf16.msra.mxu0 %v1155
        %1175 = vmatpush.bf16.msra.mxu0 %v1154
        %1176 = vmatpush.bf16.msra.mxu0 %v1153
        %1177 = vmatmul.bf16.gmra.mxu0 %v1103
        %v1178 = vpop.f32.mrf.mxu0
        %v1179 = vadd.f32 %v1120, %v1178
        %v1180 = vpop.f32.mrf.mxu0
        %v1181 = vadd.f32 %v1120, %v1180
        %1182 = vdwg.mxu0
        %v1183 = vadd.f32 %v1179, %v579
        %v1184 = vadd.f32 %v1181, %v580
        %1185 = vadd.xlane.f32.xlu0 %v1183
        %v1186 = vpop.xlane.xlu0 %1185
        %1187 = vadd.xlane.f32.xlu0 %v1184
        %v1188 = vpop.xlane.xlu0 %1187
        %v1189 = vmul.f32 %v1186, 0.03125
        %v1190 = vmul.f32 %v1188, 0.03125
        %v1191 = vsub.f32 %v1183, %v1189
        %v1192 = vsub.f32 %v1184, %v1190
        %v1193 = vmul.f32 %v1191, %v1191
        %v1194 = vmul.f32 %v1192, %v1192
        %1195 = vadd.xlane.f32.xlu0 %v1193
        %v1196 = vpop.xlane.xlu0 %1195
        %1197 = vadd.xlane.f32.xlu0 %v1194
        %v1198 = vpop.xlane.xlu0 %1197
        %v1199 = vmul.f32 %v1189, 96.0
        %v1200 = vmul.f32 %v1190, 96.0
        %v1201 = vmul.f32 %v1199, %v1189
        %v1202 = vmul.f32 %v1200, %v1190
        %v1203 = vsub.f32 %v1196, %v1201
        %v1204 = vsub.f32 %v1198, %v1202
        %v1205 = vmul.f32 %v1203, 0.03125
        %v1206 = vmul.f32 %v1204, 0.03125
        %v1207 = vadd.f32 %v1205, 1e-06
        %v1208 = vadd.f32 %v1206, 1e-06
        %v1209 = vrsqrt.pop %v1207
        %v1210 = vmul.f32 %v1209, %v1207
        %v1211 = vmul.f32 %v1210, %v1209
        %v1212 = vmul.f32 0.5, %v1211
        %v1213 = vsub.f32 1.5, %v1212
        %v1214 = vmul.f32 %v1209, %v1213
        %vm1215 = vweird.f32 %v1207
        %vm1216 = vweird.f32 %v1209
        %vm1217 = vmor %vm1215, %vm1216
        %v1218 = vsel %vm1217, %v1209, %v1214
        %v1219 = vrsqrt.pop %v1208
        %v1220 = vmul.f32 %v1219, %v1208
        %v1221 = vmul.f32 %v1220, %v1219
        %v1222 = vmul.f32 0.5, %v1221
        %v1223 = vsub.f32 1.5, %v1222
        %v1224 = vmul.f32 %v1219, %v1223
        %vm1225 = vweird.f32 %v1208
        %vm1226 = vweird.f32 %v1219
        %vm1227 = vmor %vm1225, %vm1226
        %v1228 = vsel %vm1227, %v1219, %v1224
        %v1229 = vmul.f32 %v1191, %v1218
        %v1230 = vmul.f32 %v1192, %v1228
        %v1231 = vperm.slane %v582, 4
        %v1232 = vmul.f32 %v1229, %v1231
        %v1233 = vmul.f32 %v1230, %v1231
        %v1234 = vperm.slane %v582, 5
        %v1235 = vadd.f32 %v1232, %v1234
        %v1236 = vadd.f32 %v1233, %v1234
        %v1237 = vpack.c.bf16 %v1236, %v1235
        %v1238 = vld [vmem:[%s448] sm:$0xf]
        %v1239 = vld [vmem:[%s448 + $0x4] sm:$0xf]
        %v1240 = vld [vmem:[%s448 + $0x8] sm:$0xf]
        %v1241 = vld [vmem:[%s448 + $0xc] sm:$0xf]
        %v1242 = vld [vmem:[%s448 + $0x10] sm:$0xf]
        %v1243 = vld [vmem:[%s448 + $0x14] sm:$0xf]
        %v1244 = vld [vmem:[%s448 + $0x18] sm:$0xf]
        %v1245 = vld [vmem:[%s448 + $0x1c] sm:$0xf]
        %v1246 = vld [vmem:[%s448 + $0x20] sm:$0xf]
        %v1247 = vld [vmem:[%s448 + $0x24] sm:$0xf]
        %v1248 = vld [vmem:[%s448 + $0x28] sm:$0xf]
        %v1249 = vld [vmem:[%s448 + $0x2c] sm:$0xf]
        %v1250 = vld [vmem:[%s448 + $0x30] sm:$0xf]
        %v1251 = vld [vmem:[%s448 + $0x34] sm:$0xf]
        %v1252 = vld [vmem:[%s448 + $0x38] sm:$0xf]
        %v1253 = vld [vmem:[%s448 + $0x3c] sm:$0xf]
        %v1254 = vperm.slane %v582, 6
        %v1271 = vunpack.c.l.b16 %v1238
        %v1272 = vunpack.c.l.b16 %v1239
        %v1273 = vunpack.c.l.b16 %v1240
        %v1274 = vunpack.c.l.b16 %v1241
        %v1275 = vunpack.c.l.b16 %v1242
        %v1276 = vunpack.c.l.b16 %v1243
        %v1277 = vunpack.c.l.b16 %v1244
        %v1278 = vunpack.c.l.b16 %v1245
        %v1279 = vunpack.c.l.b16 %v1246
        %v1280 = vunpack.c.l.b16 %v1247
        %v1281 = vunpack.c.l.b16 %v1248
        %v1282 = vunpack.c.l.b16 %v1249
        %v1283 = vunpack.c.l.b16 %v1250
        %v1284 = vunpack.c.l.b16 %v1251
        %v1285 = vunpack.c.l.b16 %v1252
        %v1286 = vunpack.c.l.b16 %v1253
        %v1287 = vpack.c.b16 %v1272, %v1271
        %v1288 = vpack.c.b16 %v1274, %v1273
        %v1289 = vpack.c.b16 %v1276, %v1275
        %v1290 = vpack.c.b16 %v1278, %v1277
        %v1291 = vpack.c.b16 %v1280, %v1279
        %v1292 = vpack.c.b16 %v1282, %v1281
        %v1293 = vpack.c.b16 %v1284, %v1283
        %v1294 = vpack.c.b16 %v1286, %v1285
        %1303 = vmatpush.bf16.msra.mxu0 %v1294
        %1304 = vmatpush.bf16.msra.mxu0 %v1293
        %1305 = vmatpush.bf16.msra.mxu0 %v1292
        %1306 = vmatpush.bf16.msra.mxu0 %v1291
        %1307 = vmatpush.bf16.msra.mxu0 %v1290
        %1308 = vmatpush.bf16.msra.mxu0 %v1289
        %1309 = vmatpush.bf16.msra.mxu0 %v1288
        %1310 = vmatpush.bf16.msra.mxu0 %v1287
        %1311 = vmatmul.bf16.gmra.mxu0 %v1237
        %v1312 = vpop.f32.mrf.mxu0
        %v1313 = vadd.f32 %v1254, %v1312
        %v1314 = vpop.f32.mrf.mxu0
        %v1315 = vadd.f32 %v1254, %v1314
        %1316 = vdwg.mxu0
        %v1317 = vmax.f32 %v1313, 0.0
        %v1318 = vmax.f32 %v1315, 0.0
        %v1319 = vpack.c.bf16 %v1318, %v1317
        %v1320 = vld [vmem:[%s458] sm:$0xf]
        %v1321 = vld [vmem:[%s458 + $0x4] sm:$0xf]
        %v1322 = vld [vmem:[%s458 + $0x8] sm:$0xf]
        %v1323 = vld [vmem:[%s458 + $0xc] sm:$0xf]
        %v1324 = vld [vmem:[%s458 + $0x10] sm:$0xf]
        %v1325 = vld [vmem:[%s458 + $0x14] sm:$0xf]
        %v1326 = vld [vmem:[%s458 + $0x18] sm:$0xf]
        %v1327 = vld [vmem:[%s458 + $0x1c] sm:$0xf]
        %v1328 = vld [vmem:[%s458 + $0x20] sm:$0xf]
        %v1329 = vld [vmem:[%s458 + $0x24] sm:$0xf]
        %v1330 = vld [vmem:[%s458 + $0x28] sm:$0xf]
        %v1331 = vld [vmem:[%s458 + $0x2c] sm:$0xf]
        %v1332 = vld [vmem:[%s458 + $0x30] sm:$0xf]
        %v1333 = vld [vmem:[%s458 + $0x34] sm:$0xf]
        %v1334 = vld [vmem:[%s458 + $0x38] sm:$0xf]
        %v1335 = vld [vmem:[%s458 + $0x3c] sm:$0xf]
        %v1336 = vperm.slane %v582, 7
        %v1353 = vunpack.c.l.b16 %v1320
        %v1354 = vunpack.c.l.b16 %v1321
        %v1355 = vunpack.c.l.b16 %v1322
        %v1356 = vunpack.c.l.b16 %v1323
        %v1357 = vunpack.c.l.b16 %v1324
        %v1358 = vunpack.c.l.b16 %v1325
        %v1359 = vunpack.c.l.b16 %v1326
        %v1360 = vunpack.c.l.b16 %v1327
        %v1361 = vunpack.c.l.b16 %v1328
        %v1362 = vunpack.c.l.b16 %v1329
        %v1363 = vunpack.c.l.b16 %v1330
        %v1364 = vunpack.c.l.b16 %v1331
        %v1365 = vunpack.c.l.b16 %v1332
        %v1366 = vunpack.c.l.b16 %v1333
        %v1367 = vunpack.c.l.b16 %v1334
        %v1368 = vunpack.c.l.b16 %v1335
        %v1369 = vpack.c.b16 %v1354, %v1353
        %v1370 = vpack.c.b16 %v1356, %v1355
        %v1371 = vpack.c.b16 %v1358, %v1357
        %v1372 = vpack.c.b16 %v1360, %v1359
        %v1373 = vpack.c.b16 %v1362, %v1361
        %v1374 = vpack.c.b16 %v1364, %v1363
        %v1375 = vpack.c.b16 %v1366, %v1365
        %v1376 = vpack.c.b16 %v1368, %v1367
        %1385 = vmatpush.bf16.msra.mxu0 %v1376
        %1386 = vmatpush.bf16.msra.mxu0 %v1375
        %1387 = vmatpush.bf16.msra.mxu0 %v1374
        %1388 = vmatpush.bf16.msra.mxu0 %v1373
        %1389 = vmatpush.bf16.msra.mxu0 %v1372
        %1390 = vmatpush.bf16.msra.mxu0 %v1371
        %1391 = vmatpush.bf16.msra.mxu0 %v1370
        %1392 = vmatpush.bf16.msra.mxu0 %v1369
        %1393 = vmatmul.bf16.gmra.mxu0 %v1319
        %v1394 = vpop.f32.mrf.mxu0
        %v1395 = vadd.f32 %v1336, %v1394
        %v1396 = vpop.f32.mrf.mxu0
        %v1397 = vadd.f32 %v1336, %v1396
        %1398 = vdwg.mxu0
        %v1399 = vadd.f32 %v1395, %v1235
        %v1400 = vadd.f32 %v1397, %v1236
        %1401 = vadd.xlane.f32.xlu0 %v1399
        %v1402 = vpop.xlane.xlu0 %1401
        %1403 = vadd.xlane.f32.xlu0 %v1400
        %v1404 = vpop.xlane.xlu0 %1403
        %v1405 = vmul.f32 %v1402, 0.03125
        %v1406 = vmul.f32 %v1404, 0.03125
        %v1407 = vsub.f32 %v1399, %v1405
        %v1408 = vsub.f32 %v1400, %v1406
        %v1409 = vmul.f32 %v1407, %v1407
        %v1410 = vmul.f32 %v1408, %v1408
        %1411 = vadd.xlane.f32.xlu0 %v1409
        %v1412 = vpop.xlane.xlu0 %1411
        %1413 = vadd.xlane.f32.xlu0 %v1410
        %v1414 = vpop.xlane.xlu0 %1413
        %v1415 = vmul.f32 %v1405, 96.0
        %v1416 = vmul.f32 %v1406, 96.0
        %v1417 = vmul.f32 %v1415, %v1405
        %v1418 = vmul.f32 %v1416, %v1406
        %v1419 = vsub.f32 %v1412, %v1417
        %v1420 = vsub.f32 %v1414, %v1418
        %v1421 = vmul.f32 %v1419, 0.03125
        %v1422 = vmul.f32 %v1420, 0.03125
        %v1423 = vadd.f32 %v1421, 1e-06
        %v1424 = vadd.f32 %v1422, 1e-06
        %v1425 = vrsqrt.pop %v1423
        %v1426 = vmul.f32 %v1425, %v1423
        %v1427 = vmul.f32 %v1426, %v1425
        %v1428 = vmul.f32 0.5, %v1427
        %v1429 = vsub.f32 1.5, %v1428
        %v1430 = vmul.f32 %v1425, %v1429
        %vm1431 = vweird.f32 %v1423
        %vm1432 = vweird.f32 %v1425
        %vm1433 = vmor %vm1431, %vm1432
        %v1434 = vsel %vm1433, %v1425, %v1430
        %v1435 = vrsqrt.pop %v1424
        %v1436 = vmul.f32 %v1435, %v1424
        %v1437 = vmul.f32 %v1436, %v1435
        %v1438 = vmul.f32 0.5, %v1437
        %v1439 = vsub.f32 1.5, %v1438
        %v1440 = vmul.f32 %v1435, %v1439
        %vm1441 = vweird.f32 %v1424
        %vm1442 = vweird.f32 %v1435
        %vm1443 = vmor %vm1441, %vm1442
        %v1444 = vsel %vm1443, %v1435, %v1440
        %v1445 = vmul.f32 %v1407, %v1434
        %v1446 = vmul.f32 %v1408, %v1444
        %v1447 = vperm.slane %v583, 0
        %v1448 = vmul.f32 %v1445, %v1447
        %v1449 = vmul.f32 %v1446, %v1447
        %v1450 = vperm.slane %v583, 1
        %v1451 = vadd.f32 %v1448, %v1450
        %v1452 = vadd.f32 %v1449, %v1450
        %1453 = vst [vmem:[%s568] sm:$0xff] %v1451
        %1454 = vst [vmem:[%s568 + $0x8] sm:$0xff] %v1452
        %s1455 = smul.u32 2, %s30
        %p1456 = scmp.lt.s32.totalorder %s1455, 1
        %s1457 = scalar_select %p1456, %s1455, 1
        %s1458 = smul.addr %s1457, 8
        %s1459 = scalar_lea.vmem %s9, %s1458
        // Predicated region
        $region73: #{tree_encoder_forward.1} parent=55 // pred_check
          %p1460 = pneg %p290
        $region74: #{tree_encoder_forward.1} parent=55 // pred_check_branch
          %1462 = sbr.rel (%p1460) target = $region76
        $region75: #{tree_encoder_forward.1} parent=55 // pred_region
          %s1463 = smul.u32 2, %s30
        $region76: #{tree_encoder_forward.1} parent=55 // pred_fallthru
          _
        // Predicated region
        $region77: #{tree_encoder_forward.1} parent=55 // pred_check
          %p1464 = pneg %p290
        $region78: #{tree_encoder_forward.1} parent=55 // pred_check_branch
          %1466 = sbr.rel (%p1464) target = $region80
        $region79: #{tree_encoder_forward.1} parent=55 // pred_region
          %s1467 = smul.u32 2, %s30
          %p1468 = scmp.lt.s32.totalorder %s1467, 1
          %s1469 = scalar_select %p1468, %s1467, 1
          %s1470 = smul.addr %s1469, 8
          %s1471 = scalar_lea.vmem %s9, %s1470
        $region80: #{tree_encoder_forward.1} parent=55 // pred_fallthru
          _
      $region56: #{tree_encoder_forward.1} parent=5 // pred_fallthru
        _
      %p1472 = scmp.le.s32.totalorder 2, %s21
      // Predicated region
      $region81: #{tree_encoder_forward.1} parent=5 // pred_check
        %p1473 = pneg %p1472
      $region82: #{tree_encoder_forward.1} parent=5 // pred_check_branch
        %1475 = sbr.rel (%p1473) target = $region84
      $region83: #{tree_encoder_forward.1} parent=5 // pred_region
        %s1476 = ssub.s32 %s21, 2
      $region84: #{tree_encoder_forward.1} parent=5 // pred_fallthru
        _
    $region6: #{tree_encoder_forward.1} parent=1 // loop_footer
      %s25 = sadd.s32 1, %s21
    $region7: #{tree_encoder_forward.1} parent=1 // loop_footer_branch
      %20 = sbr.rel target = $region3
    $region8: #{tree_encoder_forward.1} parent=1 // loop_exit
      _
    %1477 = vsyncpa [#allocation3], 1
    %s1478 = scalar_lea.sflag [#allocation3], 1
    %1479 = vsyncpa %s1478, 1
    %1480 = vsyncpa [#allocation5], 1
    %s1481 = scalar_lea.sflag [#allocation5], 1
    %1482 = vsyncpa %s1481, 1

</llo_original>
